<compile_context>
chip_gen: v7x
topology: tpu7x:2x2x1
jax: 0.10.0
libtpu: 0.0.40
codegen_flags: <defaults>
</compile_context>

<pallas_src>
import math

import jax
import jax.numpy as jnp
from jax import lax
from jax.experimental import pallas as pl
from jax.experimental.pallas import tpu as pltpu

# ---- model configuration (small, consistent with the module's constraints) ----
INPUT_SIZE = 18          # fixed by the module (6 position + 12 velocity features)
POS_DIM = 6
VEL_DIM = 12
HIDDEN = 32              # hidden_size
NHEAD = 4                # must divide HIDDEN
HEAD_DIM = HIDDEN // NHEAD
NUM_LAYERS = 2
FFN = HIDDEN * 4         # 128
LN_EPS = 1e-5

BATCH = 2
SEQ = 8
OUT_PAD = 128            # lane-dense padded decoder output width

# ---- packed-weight slab layout (row offsets, all static Python ints) ----
# Slab A: lane width = HIDDEN (32)
A_EMB = 0                            # fused input-embedding weight (18 rows, padded to 24)
A_PEB = 24                           # positional encoding + fused embedding bias (SEQ rows)
A_MASK = A_PEB + SEQ                 # block-diagonal head mask (NHEAD*SEQ rows)
A_LAYER0 = A_MASK + NHEAD * SEQ      # = 64
A_LAYER_STRIDE = 32 * 4 + FFN + 16   # Wq,Wk,Wv,Wo (32 each) + W2 (128) + 16 vector rows = 272
A_ROWS = A_LAYER0 + NUM_LAYERS * A_LAYER_STRIDE            # 608
# per-layer offsets inside a slab-A layer block
A_WQ, A_WK, A_WV, A_WO, A_W2, A_VEC = 0, 32, 64, 96, 128, 256

# Slab B: lane width = OUT_PAD (128)
B_DEC = 0                            # decoder weight (32 rows) + bias (row 32), padded to 40
B_LAYER0 = 40
B_LAYER_STRIDE = 40                  # W1 (32 rows) + b1 (row 32), padded to 40
B_ROWS = B_LAYER0 + NUM_LAYERS * B_LAYER_STRIDE            # 120


# -------------------------- Pallas kernel --------------------------
def transformer_kernel(x_ref, wa_ref, wb_ref, out_ref):
    def mm(a, b):
        return jnp.dot(a, b, preferred_element_type=jnp.float32)

    def layer_norm(h, w, b):
        mu = jnp.mean(h, axis=-1, keepdims=True)
        hc = h - mu
        var = jnp.mean(hc * hc, axis=-1, keepdims=True)
        return hc * lax.rsqrt(var + LN_EPS) * w + b

    x_in = x_ref[0]                                          # (S, 18)
    w_emb = wa_ref[A_EMB:A_EMB + INPUT_SIZE, :]              # (18, H)  fused pos/vel/combine
    peb = wa_ref[A_PEB:A_PEB + SEQ, :]                       # (S, H)   pe + fused bias
    hmask = wa_ref[A_MASK:A_MASK + NHEAD * SEQ, :]           # (NH*S, H) block-diag head mask

    # input embeddings + positional encoding (dropout = identity)
    x = mm(x_in, w_emb) + peb                                # (S, H)

    for l in range(NUM_LAYERS):
        a0 = A_LAYER0 + l * A_LAYER_STRIDE
        wq = wa_ref[a0 + A_WQ:a0 + A_WQ + HIDDEN, :]         # (H, H), pre-scaled by 1/sqrt(hd)
        wk = wa_ref[a0 + A_WK:a0 + A_WK + HIDDEN, :]
        wv = wa_ref[a0 + A_WV:a0 + A_WV + HIDDEN, :]
        wo = wa_ref[a0 + A_WO:a0 + A_WO + HIDDEN, :]
        w2 = wa_ref[a0 + A_W2:a0 + A_W2 + FFN, :]            # (FFN, H)
        vec = wa_ref[a0 + A_VEC:a0 + A_VEC + 16, :]          # (16, H) packed bias/LN rows
        bq, bk, bv, bo = vec[0:1], vec[1:2], vec[2:3], vec[3:4]
        ln1w, ln1b, b2 = vec[4:5], vec[5:6], vec[6:7]
        ln2w, ln2b = vec[7:8], vec[8:9]

        b0 = B_LAYER0 + l * B_LAYER_STRIDE
        w1 = wb_ref[b0:b0 + HIDDEN, :]                       # (H, FFN)
        b1 = wb_ref[b0 + HIDDEN:b0 + HIDDEN + 1, :]          # (1, FFN)

        # ---- multi-head self attention, all heads batched ----
        q = mm(x, wq) + bq                                   # (S, H)   already scaled
        k = mm(x, wk) + bk                                   # (S, H)
        v = mm(x, wv) + bv                                   # (S, H)

        # head-major replicated & masked queries: row h*S+i holds q[i] restricted to head h
        q_rep = jnp.concatenate([q] * NHEAD, axis=0) * hmask  # (NH*S, H)
        # scores[h*S+i, j] = <q_i, k_j> restricted to head h
        s = lax.dot_general(q_rep, k, (((1,), (1,)), ((), ())),
                            preferred_element_type=jnp.float32)      # (NH*S, S)
        # softmax batched across all heads (heads along sublanes)
        s = s - jnp.max(s, axis=-1, keepdims=True)
        p = jnp.exp(s)
        p = p * pl.reciprocal(jnp.sum(p, axis=-1, keepdims=True), approx=False)
        att = mm(p, v) * hmask                                # (NH*S, H), head h valid in its lanes
        # fold head blocks back to concat-over-heads layout (S, H)
        att_c = att[0:SEQ, :]
        for h in range(1, NHEAD):
            att_c = att_c + att[h * SEQ:(h + 1) * SEQ, :]
        att_c = mm(att_c, wo) + bo                            # output projection
        x = layer_norm(x + att_c, ln1w, ln1b)

        # ---- feed forward (ReLU) ----
        h1 = jnp.maximum(mm(x, w1) + b1, 0.0)                 # (S, FFN)
        ff = mm(h1, w2) + b2                                  # (S, H)
        x = layer_norm(x + ff, ln2w, ln2b)

    # pretraining decoder, lane-dense (padded to 128 output columns)
    wd = wb_ref[B_DEC:B_DEC + HIDDEN, :]                      # (H, 128)
    bd = wb_ref[B_DEC + HIDDEN:B_DEC + HIDDEN + 1, :]         # (1, 128)
    out_ref[0] = (mm(x, wd) + bd).astype(out_ref.dtype)


# -------------------------- glue / wrapper --------------------------
def positional_encoding(seq_len, d_model):
    pos = jnp.arange(seq_len, dtype=jnp.float32)[:, None]
    div = jnp.exp(jnp.arange(0, d_model, 2, dtype=jnp.float32)
                  * (-math.log(10000.0) / d_model))
    pe_sin = jnp.sin(pos * div)
    pe_cos = jnp.cos(pos * div)
    return jnp.stack([pe_sin, pe_cos], axis=-1).reshape(seq_len, d_model)


def init_params(key):
    hh = HIDDEN // 2
    keys = iter(jax.random.split(key, 16 + NUM_LAYERS * 16))

    def nrm(shape, scale):
        return scale * jax.random.normal(next(keys), shape, dtype=jnp.float32)

    params = {
        "pos_w": nrm((hh, POS_DIM), 0.3), "pos_b": nrm((hh,), 0.1),
        "vel_w": nrm((hh, VEL_DIM), 0.3), "vel_b": nrm((hh,), 0.1),
        "comb_w": nrm((HIDDEN, HIDDEN), 0.15), "comb_b": nrm((HIDDEN,), 0.1),
        "dec_w": nrm((INPUT_SIZE, HIDDEN), 0.15), "dec_b": nrm((INPUT_SIZE,), 0.1),
        "layers": [],
    }
    for _ in range(NUM_LAYERS):
        params["layers"].append({
            "in_w": nrm((3 * HIDDEN, HIDDEN), 0.15), "in_b": nrm((3 * HIDDEN,), 0.05),
            "out_w": nrm((HIDDEN, HIDDEN), 0.15), "out_b": nrm((HIDDEN,), 0.05),
            "w1": nrm((FFN, HIDDEN), 0.1), "b1": nrm((FFN,), 0.05),
            "w2": nrm((HIDDEN, FFN), 0.1), "b2": nrm((HIDDEN,), 0.05),
            "ln1_w": 1.0 + nrm((HIDDEN,), 0.05), "ln1_b": nrm((HIDDEN,), 0.05),
            "ln2_w": 1.0 + nrm((HIDDEN,), 0.05), "ln2_b": nrm((HIDDEN,), 0.05),
        })
    return params


def build_slabs(params, seq_len):
    """One-time weight repack (hoisted out of the per-call path):
    pre-transposed, scale-folded, packed into two lane-aligned f32 slabs."""
    hh = HIDDEN // 2
    scale = 1.0 / math.sqrt(HEAD_DIM)

    def pad_rows(a, rows):
        return jnp.pad(a, ((0, rows - a.shape[0]), (0, 0)))

    # fused input embedding: combine(cat(pos_emb, vel_emb)) == x @ W_emb (+ bias folded into peb)
    w_bd = jnp.zeros((INPUT_SIZE, HIDDEN), jnp.float32)
    w_bd = w_bd.at[:POS_DIM, :hh].set(params["pos_w"].T)
    w_bd = w_bd.at[POS_DIM:, hh:].set(params["vel_w"].T)
    b_bd = jnp.concatenate([params["pos_b"], params["vel_b"]])
    w_emb = w_bd @ params["comb_w"].T                                   # (18, H)
    peb = (positional_encoding(seq_len, HIDDEN)
           + b_bd @ params["comb_w"].T + params["comb_b"])              # (S, H)

    # block-diagonal head mask: M[h*S+i, d] = 1 iff d belongs to head h
    rid = jnp.arange(NHEAD * seq_len) // seq_len
    cid = jnp.arange(HIDDEN) // HEAD_DIM
    hmask = (rid[:, None] == cid[None, :]).astype(jnp.float32)          # (NH*S, H)

    a_parts = [pad_rows(w_emb, A_PEB - A_EMB), peb, hmask]

    dec_blk = jnp.zeros((B_LAYER0, OUT_PAD), jnp.float32)
    dec_blk = dec_blk.at[:HIDDEN, :INPUT_SIZE].set(params["dec_w"].T)
    dec_blk = dec_blk.at[HIDDEN, :INPUT_SIZE].set(params["dec_b"])
    b_parts = [dec_blk]

    for l in params["layers"]:
        wq = l["in_w"][:HIDDEN].T * scale            # fold 1/sqrt(hd) into Wq / bq
        wk = l["in_w"][HIDDEN:2 * HIDDEN].T
        wv = l["in_w"][2 * HIDDEN:].T
        wo = l["out_w"].T
        w2 = l["w2"].T
        vecs = jnp.stack([
            l["in_b"][:HIDDEN] * scale, l["in_b"][HIDDEN:2 * HIDDEN],
            l["in_b"][2 * HIDDEN:], l["out_b"],
            l["ln1_w"], l["ln1_b"], l["b2"],
            l["ln2_w"], l["ln2_b"]])
        vecs = pad_rows(vecs, 16)
        a_parts.append(jnp.concatenate([wq, wk, wv, wo, w2, vecs], axis=0))

        w1_blk = jnp.zeros((B_LAYER_STRIDE, OUT_PAD), jnp.float32)
        w1_blk = w1_blk.at[:HIDDEN].set(l["w1"].T)
        w1_blk = w1_blk.at[HIDDEN].set(l["b1"])
        b_parts.append(w1_blk)

    slab_a = jnp.concatenate(a_parts, axis=0)
    slab_b = jnp.concatenate(b_parts, axis=0)
    assert slab_a.shape == (A_ROWS, HIDDEN), slab_a.shape
    assert slab_b.shape == (B_ROWS, OUT_PAD), slab_b.shape
    return slab_a, slab_b


@jax.jit
def pallas_forward(x, slab_a, slab_b):
    B = x.shape[0]
    out = pl.pallas_call(
        transformer_kernel,
        out_shape=jax.ShapeDtypeStruct((B, SEQ, OUT_PAD), jnp.float32),
        grid_spec=pltpu.PrefetchScalarGridSpec(
            num_scalar_prefetch=0,
            grid=(B,),
            in_specs=[
                pl.BlockSpec((1, SEQ, INPUT_SIZE), lambda b: (b, 0, 0)),
                pl.BlockSpec((A_ROWS, HIDDEN), lambda b: (0, 0)),
                pl.BlockSpec((B_ROWS, OUT_PAD), lambda b: (0, 0)),
            ],
            out_specs=pl.BlockSpec((1, SEQ, OUT_PAD), lambda b: (b, 0, 0)),
        ),
        compiler_params=pltpu.CompilerParams(
            dimension_semantics=("parallel",)),
    )(x, slab_a, slab_b)
    return out[..., :INPUT_SIZE]                      # drop lane padding outside the kernel


# -------------------------- pure-JAX reference --------------------------
def reference_forward(params, x):
    def layer_norm(h, w, b):
        mu = jnp.mean(h, axis=-1, keepdims=True)
        var = jnp.mean((h - mu) ** 2, axis=-1, keepdims=True)
        return (h - mu) * lax.rsqrt(var + LN_EPS) * w + b

    B, S, _ = x.shape
    pe = positional_encoding(S, HIDDEN)
    pos = x[..., :POS_DIM]
    vel = x[..., POS_DIM:]
    pe_emb = pos @ params["pos_w"].T + params["pos_b"]
    ve_emb = vel @ params["vel_w"].T + params["vel_b"]
    h = jnp.concatenate([pe_emb, ve_emb], axis=-1) @ params["comb_w"].T + params["comb_b"]
    h = h + pe[None]
    for layer in params["layers"]:
        qkv = h @ layer["in_w"].T + layer["in_b"]
        q, k, v = jnp.split(qkv, 3, axis=-1)
        q = q.reshape(B, S, NHEAD, HEAD_DIM).transpose(0, 2, 1, 3)
        k = k.reshape(B, S, NHEAD, HEAD_DIM).transpose(0, 2, 1, 3)
        v = v.reshape(B, S, NHEAD, HEAD_DIM).transpose(0, 2, 1, 3)
        s = (q @ k.transpose(0, 1, 3, 2)) / math.sqrt(HEAD_DIM)
        a = jax.nn.softmax(s, axis=-1)
        o = (a @ v).transpose(0, 2, 1, 3).reshape(B, S, HIDDEN)
        o = o @ layer["out_w"].T + layer["out_b"]
        h = layer_norm(h + o, layer["ln1_w"], layer["ln1_b"])
        f = jax.nn.relu(h @ layer["w1"].T + layer["b1"]) @ layer["w2"].T + layer["b2"]
        h = layer_norm(h + f, layer["ln2_w"], layer["ln2_b"])
    return h @ params["dec_w"].T + params["dec_b"]


if __name__ == "__main__":
    key = jax.random.PRNGKey(0)
    k_params, k_x = jax.random.split(key)
    params = init_params(k_params)
    x = jax.random.normal(k_x, (BATCH, SEQ, INPUT_SIZE), dtype=jnp.float32)

    slab_a, slab_b = build_slabs(params, SEQ)   # one-time repack, hoisted out of forward
    out = jax.block_until_ready(pallas_forward(x, slab_a, slab_b))
    ref = jax.block_until_ready(reference_forward(params, x))

    assert out.shape == (BATCH, SEQ, INPUT_SIZE)
    assert jnp.allclose(out, ref, atol=1e-3, rtol=1e-3), float(jnp.max(jnp.abs(out - ref)))
    print("KERNEL_OK")
</pallas_src>

<mosaic_0001>
module attributes {stable_mosaic.version = 11 : i64} {
  func.func @transformer_kernel(%arg0: i32, %arg1: memref<1x8x18xf32, #tpu.memory_space<vmem>>, %arg2: memref<608x32xf32, #tpu.memory_space<vmem>>, %arg3: memref<120x128xf32, #tpu.memory_space<vmem>>, %arg4: memref<1x8x128xf32, #tpu.memory_space<vmem>>) attributes {dimension_semantics = [#tpu.dimension_semantics<parallel>], iteration_bounds = array<i64: 2>, scalar_prefetch = 0 : i64, scratch_operands = 0 : i64, tpu.core_type = #tpu.core_type<tc>, window_params = [{transform_indices = @transform_0, window_bounds = array<i64: 1, 8, 18>}, {pipeline_mode = #tpu.pipeline_mode<synchronous>, transform_indices = @transform_1, window_bounds = array<i64: 608, 32>}, {pipeline_mode = #tpu.pipeline_mode<synchronous>, transform_indices = @transform_2, window_bounds = array<i64: 120, 128>}, {transform_indices = @transform_3, window_bounds = array<i64: 1, 8, 128>}]} {
    %c0 = arith.constant 0 : index
    %c0_0 = arith.constant 0 : index
    %c0_1 = arith.constant 0 : index
    %0 = vector.load %arg1[%c0, %c0_0, %c0_1] : memref<1x8x18xf32, #tpu.memory_space<vmem>>, vector<1x8x18xf32>
    %1 = vector.shape_cast %0 : vector<1x8x18xf32> to vector<8x18xf32>
    %c0_2 = arith.constant 0 : index
    %c0_3 = arith.constant 0 : index
    %2 = vector.load %arg2[%c0_2, %c0_3] : memref<608x32xf32, #tpu.memory_space<vmem>>, vector<18x32xf32>
    %c24 = arith.constant 24 : index
    %c0_4 = arith.constant 0 : index
    %3 = vector.load %arg2[%c24, %c0_4] : memref<608x32xf32, #tpu.memory_space<vmem>>, vector<8x32xf32>
    %c32 = arith.constant 32 : index
    %c0_5 = arith.constant 0 : index
    %4 = vector.load %arg2[%c32, %c0_5] : memref<608x32xf32, #tpu.memory_space<vmem>>, vector<32x32xf32>
    %cst = arith.constant dense<0.000000e+00> : vector<8x32xf32>
    %5 = tpu.matmul %1, %2, %cst {dimension_numbers = #tpu.dot_dimension_numbers<[1], [0], [0], [1], [0, 0, 1, 1], [], []>} : vector<8x18xf32>, vector<18x32xf32>, vector<8x32xf32> -> vector<8x32xf32>
    %6 = arith.addf %5, %3 : vector<8x32xf32>
    %c64 = arith.constant 64 : index
    %c0_6 = arith.constant 0 : index
    %7 = vector.load %arg2[%c64, %c0_6] : memref<608x32xf32, #tpu.memory_space<vmem>>, vector<32x32xf32>
    %c96 = arith.constant 96 : index
    %c0_7 = arith.constant 0 : index
    %8 = vector.load %arg2[%c96, %c0_7] : memref<608x32xf32, #tpu.memory_space<vmem>>, vector<32x32xf32>
    %c128 = arith.constant 128 : index
    %c0_8 = arith.constant 0 : index
    %9 = vector.load %arg2[%c128, %c0_8] : memref<608x32xf32, #tpu.memory_space<vmem>>, vector<32x32xf32>
    %c160 = arith.constant 160 : index
    %c0_9 = arith.constant 0 : index
    %10 = vector.load %arg2[%c160, %c0_9] : memref<608x32xf32, #tpu.memory_space<vmem>>, vector<32x32xf32>
    %c192 = arith.constant 192 : index
    %c0_10 = arith.constant 0 : index
    %11 = vector.load %arg2[%c192, %c0_10] : memref<608x32xf32, #tpu.memory_space<vmem>>, vector<128x32xf32>
    %c320 = arith.constant 320 : index
    %c0_11 = arith.constant 0 : index
    %12 = vector.load %arg2[%c320, %c0_11] : memref<608x32xf32, #tpu.memory_space<vmem>>, vector<16x32xf32>
    %13 = vector.extract_strided_slice %12 {offsets = [0, 0], sizes = [1, 32], strides = [1, 1]} : vector<16x32xf32> to vector<1x32xf32>
    %14 = vector.extract_strided_slice %12 {offsets = [1, 0], sizes = [1, 32], strides = [1, 1]} : vector<16x32xf32> to vector<1x32xf32>
    %15 = vector.extract_strided_slice %12 {offsets = [2, 0], sizes = [1, 32], strides = [1, 1]} : vector<16x32xf32> to vector<1x32xf32>
    %16 = vector.extract_strided_slice %12 {offsets = [3, 0], sizes = [1, 32], strides = [1, 1]} : vector<16x32xf32> to vector<1x32xf32>
    %17 = vector.extract_strided_slice %12 {offsets = [4, 0], sizes = [1, 32], strides = [1, 1]} : vector<16x32xf32> to vector<1x32xf32>
    %18 = vector.extract_strided_slice %12 {offsets = [5, 0], sizes = [1, 32], strides = [1, 1]} : vector<16x32xf32> to vector<1x32xf32>
    %19 = vector.extract_strided_slice %12 {offsets = [6, 0], sizes = [1, 32], strides = [1, 1]} : vector<16x32xf32> to vector<1x32xf32>
    %20 = vector.extract_strided_slice %12 {offsets = [7, 0], sizes = [1, 32], strides = [1, 1]} : vector<16x32xf32> to vector<1x32xf32>
    %21 = vector.extract_strided_slice %12 {offsets = [8, 0], sizes = [1, 32], strides = [1, 1]} : vector<16x32xf32> to vector<1x32xf32>
    %c40 = arith.constant 40 : index
    %c0_12 = arith.constant 0 : index
    %22 = vector.load %arg3[%c40, %c0_12] : memref<120x128xf32, #tpu.memory_space<vmem>>, vector<32x128xf32>
    %c72 = arith.constant 72 : index
    %c0_13 = arith.constant 0 : index
    %23 = vector.load %arg3[%c72, %c0_13] : memref<120x128xf32, #tpu.memory_space<vmem>>, vector<1x128xf32>
    %cst_14 = arith.constant dense<0.000000e+00> : vector<8x32xf32>
    %24 = tpu.matmul %6, %7, %cst_14 {dimension_numbers = #tpu.dot_dimension_numbers<[1], [0], [0], [1], [0, 0, 1, 1], [], []>} : vector<8x32xf32>, vector<32x32xf32>, vector<8x32xf32> -> vector<8x32xf32>
    %25 = vector.broadcast %13 : vector<1x32xf32> to vector<8x32xf32>
    %26 = arith.addf %24, %25 : vector<8x32xf32>
    %cst_15 = arith.constant dense<0.000000e+00> : vector<8x32xf32>
    %27 = tpu.matmul %6, %8, %cst_15 {dimension_numbers = #tpu.dot_dimension_numbers<[1], [0], [0], [1], [0, 0, 1, 1], [], []>} : vector<8x32xf32>, vector<32x32xf32>, vector<8x32xf32> -> vector<8x32xf32>
    %28 = vector.broadcast %14 : vector<1x32xf32> to vector<8x32xf32>
    %29 = arith.addf %27, %28 : vector<8x32xf32>
    %cst_16 = arith.constant dense<0.000000e+00> : vector<8x32xf32>
    %30 = tpu.matmul %6, %9, %cst_16 {dimension_numbers = #tpu.dot_dimension_numbers<[1], [0], [0], [1], [0, 0, 1, 1], [], []>} : vector<8x32xf32>, vector<32x32xf32>, vector<8x32xf32> -> vector<8x32xf32>
    %31 = vector.broadcast %15 : vector<1x32xf32> to vector<8x32xf32>
    %32 = arith.addf %30, %31 : vector<8x32xf32>
    %33 = tpu.concatenate %26, %26, %26, %26 in 0 : vector<8x32xf32>, vector<8x32xf32>, vector<8x32xf32>, vector<8x32xf32> -> vector<32x32xf32>
    %34 = arith.mulf %33, %4 : vector<32x32xf32>
    %cst_17 = arith.constant dense<0.000000e+00> : vector<32x8xf32>
    %35 = tpu.matmul %34, %29, %cst_17 {dimension_numbers = #tpu.dot_dimension_numbers<[1], [1], [0], [0], [0, 0, 1, 0], [], []>} : vector<32x32xf32>, vector<8x32xf32>, vector<32x8xf32> -> vector<32x8xf32>
    %cst_18 = arith.constant dense<0xFF800000> : vector<32xf32>
    %36 = vector.multi_reduction <maximumf>, %35, %cst_18 [1] : vector<32x8xf32> to vector<32xf32>
    %37 = vector.shape_cast %36 : vector<32xf32> to vector<32x1xf32>
    %38 = vector.broadcast %37 : vector<32x1xf32> to vector<32x8xf32>
    %39 = arith.subf %35, %38 : vector<32x8xf32>
    %40 = math.exp %39 : vector<32x8xf32>
    %cst_19 = arith.constant dense<0.000000e+00> : vector<32xf32>
    %41 = vector.multi_reduction <add>, %40, %cst_19 [1] : vector<32x8xf32> to vector<32xf32>
    %42 = vector.shape_cast %41 : vector<32xf32> to vector<32x1xf32>
    %43 = tpu.reciprocal %42 : vector<32x1xf32> -> vector<32x1xf32>
    %44 = vector.broadcast %43 : vector<32x1xf32> to vector<32x8xf32>
    %45 = arith.mulf %40, %44 : vector<32x8xf32>
    %cst_20 = arith.constant dense<0.000000e+00> : vector<32x32xf32>
    %46 = tpu.matmul %45, %32, %cst_20 {dimension_numbers = #tpu.dot_dimension_numbers<[1], [0], [0], [1], [0, 0, 1, 1], [], []>} : vector<32x8xf32>, vector<8x32xf32>, vector<32x32xf32> -> vector<32x32xf32>
    %47 = arith.mulf %46, %4 : vector<32x32xf32>
    %48 = vector.extract_strided_slice %47 {offsets = [0, 0], sizes = [8, 32], strides = [1, 1]} : vector<32x32xf32> to vector<8x32xf32>
    %49 = vector.extract_strided_slice %47 {offsets = [8, 0], sizes = [8, 32], strides = [1, 1]} : vector<32x32xf32> to vector<8x32xf32>
    %50 = arith.addf %48, %49 : vector<8x32xf32>
    %51 = vector.extract_strided_slice %47 {offsets = [16, 0], sizes = [8, 32], strides = [1, 1]} : vector<32x32xf32> to vector<8x32xf32>
    %52 = arith.addf %50, %51 : vector<8x32xf32>
    %53 = vector.extract_strided_slice %47 {offsets = [24, 0], sizes = [8, 32], strides = [1, 1]} : vector<32x32xf32> to vector<8x32xf32>
    %54 = arith.addf %52, %53 : vector<8x32xf32>
    %cst_21 = arith.constant dense<0.000000e+00> : vector<8x32xf32>
    %55 = tpu.matmul %54, %10, %cst_21 {dimension_numbers = #tpu.dot_dimension_numbers<[1], [0], [0], [1], [0, 0, 1, 1], [], []>} : vector<8x32xf32>, vector<32x32xf32>, vector<8x32xf32> -> vector<8x32xf32>
    %56 = vector.broadcast %16 : vector<1x32xf32> to vector<8x32xf32>
    %57 = arith.addf %55, %56 : vector<8x32xf32>
    %58 = arith.addf %6, %57 : vector<8x32xf32>
    %cst_22 = arith.constant dense<0.000000e+00> : vector<8xf32>
    %59 = vector.multi_reduction <add>, %58, %cst_22 [1] : vector<8x32xf32> to vector<8xf32>
    %60 = vector.shape_cast %59 : vector<8xf32> to vector<8x1xf32>
    %cst_23 = arith.constant 3.200000e+01 : f32
    %61 = vector.broadcast %cst_23 : f32 to vector<8x1xf32>
    %62 = arith.divf %60, %61 : vector<8x1xf32>
    %63 = vector.broadcast %62 : vector<8x1xf32> to vector<8x32xf32>
    %64 = arith.subf %58, %63 : vector<8x32xf32>
    %65 = arith.mulf %64, %64 : vector<8x32xf32>
    %cst_24 = arith.constant dense<0.000000e+00> : vector<8xf32>
    %66 = vector.multi_reduction <add>, %65, %cst_24 [1] : vector<8x32xf32> to vector<8xf32>
    %67 = vector.shape_cast %66 : vector<8xf32> to vector<8x1xf32>
    %cst_25 = arith.constant 3.200000e+01 : f32
    %68 = vector.broadcast %cst_25 : f32 to vector<8x1xf32>
    %69 = arith.divf %67, %68 : vector<8x1xf32>
    %cst_26 = arith.constant 9.99999974E-6 : f32
    %70 = vector.broadcast %cst_26 : f32 to vector<8x1xf32>
    %71 = arith.addf %69, %70 : vector<8x1xf32>
    %72 = math.rsqrt %71 : vector<8x1xf32>
    %73 = vector.broadcast %72 : vector<8x1xf32> to vector<8x32xf32>
    %74 = arith.mulf %64, %73 : vector<8x32xf32>
    %75 = vector.broadcast %17 : vector<1x32xf32> to vector<8x32xf32>
    %76 = arith.mulf %74, %75 : vector<8x32xf32>
    %77 = vector.broadcast %18 : vector<1x32xf32> to vector<8x32xf32>
    %78 = arith.addf %76, %77 : vector<8x32xf32>
    %cst_27 = arith.constant dense<0.000000e+00> : vector<8x128xf32>
    %79 = tpu.matmul %78, %22, %cst_27 {dimension_numbers = #tpu.dot_dimension_numbers<[1], [0], [0], [1], [0, 0, 1, 1], [], []>} : vector<8x32xf32>, vector<32x128xf32>, vector<8x128xf32> -> vector<8x128xf32>
    %80 = vector.broadcast %23 : vector<1x128xf32> to vector<8x128xf32>
    %81 = arith.addf %79, %80 : vector<8x128xf32>
    %cst_28 = arith.constant 0.000000e+00 : f32
    %82 = vector.broadcast %cst_28 : f32 to vector<8x128xf32>
    %83 = arith.maximumf %81, %82 : vector<8x128xf32>
    %cst_29 = arith.constant dense<0.000000e+00> : vector<8x32xf32>
    %84 = tpu.matmul %83, %11, %cst_29 {dimension_numbers = #tpu.dot_dimension_numbers<[1], [0], [0], [1], [0, 0, 1, 1], [], []>} : vector<8x128xf32>, vector<128x32xf32>, vector<8x32xf32> -> vector<8x32xf32>
    %85 = vector.broadcast %19 : vector<1x32xf32> to vector<8x32xf32>
    %86 = arith.addf %84, %85 : vector<8x32xf32>
    %87 = arith.addf %78, %86 : vector<8x32xf32>
    %cst_30 = arith.constant dense<0.000000e+00> : vector<8xf32>
    %88 = vector.multi_reduction <add>, %87, %cst_30 [1] : vector<8x32xf32> to vector<8xf32>
    %89 = vector.shape_cast %88 : vector<8xf32> to vector<8x1xf32>
    %cst_31 = arith.constant 3.200000e+01 : f32
    %90 = vector.broadcast %cst_31 : f32 to vector<8x1xf32>
    %91 = arith.divf %89, %90 : vector<8x1xf32>
    %92 = vector.broadcast %91 : vector<8x1xf32> to vector<8x32xf32>
    %93 = arith.subf %87, %92 : vector<8x32xf32>
    %94 = arith.mulf %93, %93 : vector<8x32xf32>
    %cst_32 = arith.constant dense<0.000000e+00> : vector<8xf32>
    %95 = vector.multi_reduction <add>, %94, %cst_32 [1] : vector<8x32xf32> to vector<8xf32>
    %96 = vector.shape_cast %95 : vector<8xf32> to vector<8x1xf32>
    %cst_33 = arith.constant 3.200000e+01 : f32
    %97 = vector.broadcast %cst_33 : f32 to vector<8x1xf32>
    %98 = arith.divf %96, %97 : vector<8x1xf32>
    %cst_34 = arith.constant 9.99999974E-6 : f32
    %99 = vector.broadcast %cst_34 : f32 to vector<8x1xf32>
    %100 = arith.addf %98, %99 : vector<8x1xf32>
    %101 = math.rsqrt %100 : vector<8x1xf32>
    %102 = vector.broadcast %101 : vector<8x1xf32> to vector<8x32xf32>
    %103 = arith.mulf %93, %102 : vector<8x32xf32>
    %104 = vector.broadcast %20 : vector<1x32xf32> to vector<8x32xf32>
    %105 = arith.mulf %103, %104 : vector<8x32xf32>
    %106 = vector.broadcast %21 : vector<1x32xf32> to vector<8x32xf32>
    %107 = arith.addf %105, %106 : vector<8x32xf32>
    %c336 = arith.constant 336 : index
    %c0_35 = arith.constant 0 : index
    %108 = vector.load %arg2[%c336, %c0_35] : memref<608x32xf32, #tpu.memory_space<vmem>>, vector<32x32xf32>
    %c368 = arith.constant 368 : index
    %c0_36 = arith.constant 0 : index
    %109 = vector.load %arg2[%c368, %c0_36] : memref<608x32xf32, #tpu.memory_space<vmem>>, vector<32x32xf32>
    %c400 = arith.constant 400 : index
    %c0_37 = arith.constant 0 : index
    %110 = vector.load %arg2[%c400, %c0_37] : memref<608x32xf32, #tpu.memory_space<vmem>>, vector<32x32xf32>
    %c432 = arith.constant 432 : index
    %c0_38 = arith.constant 0 : index
    %111 = vector.load %arg2[%c432, %c0_38] : memref<608x32xf32, #tpu.memory_space<vmem>>, vector<32x32xf32>
    %c464 = arith.constant 464 : index
    %c0_39 = arith.constant 0 : index
    %112 = vector.load %arg2[%c464, %c0_39] : memref<608x32xf32, #tpu.memory_space<vmem>>, vector<128x32xf32>
    %c592 = arith.constant 592 : index
    %c0_40 = arith.constant 0 : index
    %113 = vector.load %arg2[%c592, %c0_40] : memref<608x32xf32, #tpu.memory_space<vmem>>, vector<16x32xf32>
    %114 = vector.extract_strided_slice %113 {offsets = [0, 0], sizes = [1, 32], strides = [1, 1]} : vector<16x32xf32> to vector<1x32xf32>
    %115 = vector.extract_strided_slice %113 {offsets = [1, 0], sizes = [1, 32], strides = [1, 1]} : vector<16x32xf32> to vector<1x32xf32>
    %116 = vector.extract_strided_slice %113 {offsets = [2, 0], sizes = [1, 32], strides = [1, 1]} : vector<16x32xf32> to vector<1x32xf32>
    %117 = vector.extract_strided_slice %113 {offsets = [3, 0], sizes = [1, 32], strides = [1, 1]} : vector<16x32xf32> to vector<1x32xf32>
    %118 = vector.extract_strided_slice %113 {offsets = [4, 0], sizes = [1, 32], strides = [1, 1]} : vector<16x32xf32> to vector<1x32xf32>
    %119 = vector.extract_strided_slice %113 {offsets = [5, 0], sizes = [1, 32], strides = [1, 1]} : vector<16x32xf32> to vector<1x32xf32>
    %120 = vector.extract_strided_slice %113 {offsets = [6, 0], sizes = [1, 32], strides = [1, 1]} : vector<16x32xf32> to vector<1x32xf32>
    %121 = vector.extract_strided_slice %113 {offsets = [7, 0], sizes = [1, 32], strides = [1, 1]} : vector<16x32xf32> to vector<1x32xf32>
    %122 = vector.extract_strided_slice %113 {offsets = [8, 0], sizes = [1, 32], strides = [1, 1]} : vector<16x32xf32> to vector<1x32xf32>
    %c80 = arith.constant 80 : index
    %c0_41 = arith.constant 0 : index
    %123 = vector.load %arg3[%c80, %c0_41] : memref<120x128xf32, #tpu.memory_space<vmem>>, vector<32x128xf32>
    %c112 = arith.constant 112 : index
    %c0_42 = arith.constant 0 : index
    %124 = vector.load %arg3[%c112, %c0_42] : memref<120x128xf32, #tpu.memory_space<vmem>>, vector<1x128xf32>
    %cst_43 = arith.constant dense<0.000000e+00> : vector<8x32xf32>
    %125 = tpu.matmul %107, %108, %cst_43 {dimension_numbers = #tpu.dot_dimension_numbers<[1], [0], [0], [1], [0, 0, 1, 1], [], []>} : vector<8x32xf32>, vector<32x32xf32>, vector<8x32xf32> -> vector<8x32xf32>
    %126 = vector.broadcast %114 : vector<1x32xf32> to vector<8x32xf32>
    %127 = arith.addf %125, %126 : vector<8x32xf32>
    %cst_44 = arith.constant dense<0.000000e+00> : vector<8x32xf32>
    %128 = tpu.matmul %107, %109, %cst_44 {dimension_numbers = #tpu.dot_dimension_numbers<[1], [0], [0], [1], [0, 0, 1, 1], [], []>} : vector<8x32xf32>, vector<32x32xf32>, vector<8x32xf32> -> vector<8x32xf32>
    %129 = vector.broadcast %115 : vector<1x32xf32> to vector<8x32xf32>
    %130 = arith.addf %128, %129 : vector<8x32xf32>
    %cst_45 = arith.constant dense<0.000000e+00> : vector<8x32xf32>
    %131 = tpu.matmul %107, %110, %cst_45 {dimension_numbers = #tpu.dot_dimension_numbers<[1], [0], [0], [1], [0, 0, 1, 1], [], []>} : vector<8x32xf32>, vector<32x32xf32>, vector<8x32xf32> -> vector<8x32xf32>
    %132 = vector.broadcast %116 : vector<1x32xf32> to vector<8x32xf32>
    %133 = arith.addf %131, %132 : vector<8x32xf32>
    %134 = tpu.concatenate %127, %127, %127, %127 in 0 : vector<8x32xf32>, vector<8x32xf32>, vector<8x32xf32>, vector<8x32xf32> -> vector<32x32xf32>
    %135 = arith.mulf %134, %4 : vector<32x32xf32>
    %cst_46 = arith.constant dense<0.000000e+00> : vector<32x8xf32>
    %136 = tpu.matmul %135, %130, %cst_46 {dimension_numbers = #tpu.dot_dimension_numbers<[1], [1], [0], [0], [0, 0, 1, 0], [], []>} : vector<32x32xf32>, vector<8x32xf32>, vector<32x8xf32> -> vector<32x8xf32>
    %cst_47 = arith.constant dense<0xFF800000> : vector<32xf32>
    %137 = vector.multi_reduction <maximumf>, %136, %cst_47 [1] : vector<32x8xf32> to vector<32xf32>
    %138 = vector.shape_cast %137 : vector<32xf32> to vector<32x1xf32>
    %139 = vector.broadcast %138 : vector<32x1xf32> to vector<32x8xf32>
    %140 = arith.subf %136, %139 : vector<32x8xf32>
    %141 = math.exp %140 : vector<32x8xf32>
    %cst_48 = arith.constant dense<0.000000e+00> : vector<32xf32>
    %142 = vector.multi_reduction <add>, %141, %cst_48 [1] : vector<32x8xf32> to vector<32xf32>
    %143 = vector.shape_cast %142 : vector<32xf32> to vector<32x1xf32>
    %144 = tpu.reciprocal %143 : vector<32x1xf32> -> vector<32x1xf32>
    %145 = vector.broadcast %144 : vector<32x1xf32> to vector<32x8xf32>
    %146 = arith.mulf %141, %145 : vector<32x8xf32>
    %cst_49 = arith.constant dense<0.000000e+00> : vector<32x32xf32>
    %147 = tpu.matmul %146, %133, %cst_49 {dimension_numbers = #tpu.dot_dimension_numbers<[1], [0], [0], [1], [0, 0, 1, 1], [], []>} : vector<32x8xf32>, vector<8x32xf32>, vector<32x32xf32> -> vector<32x32xf32>
    %148 = arith.mulf %147, %4 : vector<32x32xf32>
    %149 = vector.extract_strided_slice %148 {offsets = [0, 0], sizes = [8, 32], strides = [1, 1]} : vector<32x32xf32> to vector<8x32xf32>
    %150 = vector.extract_strided_slice %148 {offsets = [8, 0], sizes = [8, 32], strides = [1, 1]} : vector<32x32xf32> to vector<8x32xf32>
    %151 = arith.addf %149, %150 : vector<8x32xf32>
    %152 = vector.extract_strided_slice %148 {offsets = [16, 0], sizes = [8, 32], strides = [1, 1]} : vector<32x32xf32> to vector<8x32xf32>
    %153 = arith.addf %151, %152 : vector<8x32xf32>
    %154 = vector.extract_strided_slice %148 {offsets = [24, 0], sizes = [8, 32], strides = [1, 1]} : vector<32x32xf32> to vector<8x32xf32>
    %155 = arith.addf %153, %154 : vector<8x32xf32>
    %cst_50 = arith.constant dense<0.000000e+00> : vector<8x32xf32>
    %156 = tpu.matmul %155, %111, %cst_50 {dimension_numbers = #tpu.dot_dimension_numbers<[1], [0], [0], [1], [0, 0, 1, 1], [], []>} : vector<8x32xf32>, vector<32x32xf32>, vector<8x32xf32> -> vector<8x32xf32>
    %157 = vector.broadcast %117 : vector<1x32xf32> to vector<8x32xf32>
    %158 = arith.addf %156, %157 : vector<8x32xf32>
    %159 = arith.addf %107, %158 : vector<8x32xf32>
    %cst_51 = arith.constant dense<0.000000e+00> : vector<8xf32>
    %160 = vector.multi_reduction <add>, %159, %cst_51 [1] : vector<8x32xf32> to vector<8xf32>
    %161 = vector.shape_cast %160 : vector<8xf32> to vector<8x1xf32>
    %cst_52 = arith.constant 3.200000e+01 : f32
    %162 = vector.broadcast %cst_52 : f32 to vector<8x1xf32>
    %163 = arith.divf %161, %162 : vector<8x1xf32>
    %164 = vector.broadcast %163 : vector<8x1xf32> to vector<8x32xf32>
    %165 = arith.subf %159, %164 : vector<8x32xf32>
    %166 = arith.mulf %165, %165 : vector<8x32xf32>
    %cst_53 = arith.constant dense<0.000000e+00> : vector<8xf32>
    %167 = vector.multi_reduction <add>, %166, %cst_53 [1] : vector<8x32xf32> to vector<8xf32>
    %168 = vector.shape_cast %167 : vector<8xf32> to vector<8x1xf32>
    %cst_54 = arith.constant 3.200000e+01 : f32
    %169 = vector.broadcast %cst_54 : f32 to vector<8x1xf32>
    %170 = arith.divf %168, %169 : vector<8x1xf32>
    %cst_55 = arith.constant 9.99999974E-6 : f32
    %171 = vector.broadcast %cst_55 : f32 to vector<8x1xf32>
    %172 = arith.addf %170, %171 : vector<8x1xf32>
    %173 = math.rsqrt %172 : vector<8x1xf32>
    %174 = vector.broadcast %173 : vector<8x1xf32> to vector<8x32xf32>
    %175 = arith.mulf %165, %174 : vector<8x32xf32>
    %176 = vector.broadcast %118 : vector<1x32xf32> to vector<8x32xf32>
    %177 = arith.mulf %175, %176 : vector<8x32xf32>
    %178 = vector.broadcast %119 : vector<1x32xf32> to vector<8x32xf32>
    %179 = arith.addf %177, %178 : vector<8x32xf32>
    %cst_56 = arith.constant dense<0.000000e+00> : vector<8x128xf32>
    %180 = tpu.matmul %179, %123, %cst_56 {dimension_numbers = #tpu.dot_dimension_numbers<[1], [0], [0], [1], [0, 0, 1, 1], [], []>} : vector<8x32xf32>, vector<32x128xf32>, vector<8x128xf32> -> vector<8x128xf32>
    %181 = vector.broadcast %124 : vector<1x128xf32> to vector<8x128xf32>
    %182 = arith.addf %180, %181 : vector<8x128xf32>
    %cst_57 = arith.constant 0.000000e+00 : f32
    %183 = vector.broadcast %cst_57 : f32 to vector<8x128xf32>
    %184 = arith.maximumf %182, %183 : vector<8x128xf32>
    %cst_58 = arith.constant dense<0.000000e+00> : vector<8x32xf32>
    %185 = tpu.matmul %184, %112, %cst_58 {dimension_numbers = #tpu.dot_dimension_numbers<[1], [0], [0], [1], [0, 0, 1, 1], [], []>} : vector<8x128xf32>, vector<128x32xf32>, vector<8x32xf32> -> vector<8x32xf32>
    %186 = vector.broadcast %120 : vector<1x32xf32> to vector<8x32xf32>
    %187 = arith.addf %185, %186 : vector<8x32xf32>
    %188 = arith.addf %179, %187 : vector<8x32xf32>
    %cst_59 = arith.constant dense<0.000000e+00> : vector<8xf32>
    %189 = vector.multi_reduction <add>, %188, %cst_59 [1] : vector<8x32xf32> to vector<8xf32>
    %190 = vector.shape_cast %189 : vector<8xf32> to vector<8x1xf32>
    %cst_60 = arith.constant 3.200000e+01 : f32
    %191 = vector.broadcast %cst_60 : f32 to vector<8x1xf32>
    %192 = arith.divf %190, %191 : vector<8x1xf32>
    %193 = vector.broadcast %192 : vector<8x1xf32> to vector<8x32xf32>
    %194 = arith.subf %188, %193 : vector<8x32xf32>
    %195 = arith.mulf %194, %194 : vector<8x32xf32>
    %cst_61 = arith.constant dense<0.000000e+00> : vector<8xf32>
    %196 = vector.multi_reduction <add>, %195, %cst_61 [1] : vector<8x32xf32> to vector<8xf32>
    %197 = vector.shape_cast %196 : vector<8xf32> to vector<8x1xf32>
    %cst_62 = arith.constant 3.200000e+01 : f32
    %198 = vector.broadcast %cst_62 : f32 to vector<8x1xf32>
    %199 = arith.divf %197, %198 : vector<8x1xf32>
    %cst_63 = arith.constant 9.99999974E-6 : f32
    %200 = vector.broadcast %cst_63 : f32 to vector<8x1xf32>
    %201 = arith.addf %199, %200 : vector<8x1xf32>
    %202 = math.rsqrt %201 : vector<8x1xf32>
    %203 = vector.broadcast %202 : vector<8x1xf32> to vector<8x32xf32>
    %204 = arith.mulf %194, %203 : vector<8x32xf32>
    %205 = vector.broadcast %121 : vector<1x32xf32> to vector<8x32xf32>
    %206 = arith.mulf %204, %205 : vector<8x32xf32>
    %207 = vector.broadcast %122 : vector<1x32xf32> to vector<8x32xf32>
    %208 = arith.addf %206, %207 : vector<8x32xf32>
    %c0_64 = arith.constant 0 : index
    %c0_65 = arith.constant 0 : index
    %209 = vector.load %arg3[%c0_64, %c0_65] : memref<120x128xf32, #tpu.memory_space<vmem>>, vector<32x128xf32>
    %c32_66 = arith.constant 32 : index
    %c0_67 = arith.constant 0 : index
    %210 = vector.load %arg3[%c32_66, %c0_67] : memref<120x128xf32, #tpu.memory_space<vmem>>, vector<1x128xf32>
    %cst_68 = arith.constant dense<0.000000e+00> : vector<8x128xf32>
    %211 = tpu.matmul %208, %209, %cst_68 {dimension_numbers = #tpu.dot_dimension_numbers<[1], [0], [0], [1], [0, 0, 1, 1], [], []>} : vector<8x32xf32>, vector<32x128xf32>, vector<8x128xf32> -> vector<8x128xf32>
    %212 = vector.broadcast %210 : vector<1x128xf32> to vector<8x128xf32>
    %213 = arith.addf %211, %212 : vector<8x128xf32>
    %c0_69 = arith.constant 0 : index
    %c0_70 = arith.constant 0 : index
    %c0_71 = arith.constant 0 : index
    %214 = vector.load %arg4[%c0_69, %c0_70, %c0_71] : memref<1x8x128xf32, #tpu.memory_space<vmem>>, vector<1x8x128xf32>
    %215 = vector.shape_cast %214 : vector<1x8x128xf32> to vector<8x128xf32>
    %216 = vector.shape_cast %213 : vector<8x128xf32> to vector<1x8x128xf32>
    tpu.vector_store %arg4[%c0_69, %c0_70, %c0_71], %216 {strides = array<i32>} : memref<1x8x128xf32, #tpu.memory_space<vmem>>, vector<1x8x128xf32>,
    return
  }
  func.func @transform_0(%arg0: i32) -> (i32, i32, i32) {
    %c0_i32 = arith.constant 0 : i32
    %c0_i32_0 = arith.constant 0 : i32
    %c0_i32_1 = arith.constant 0 : i32
    return %arg0, %c0_i32, %c0_i32_0 : i32, i32, i32
  }
  func.func @transform_1(%arg0: i32) -> (i32, i32) {
    %c0_i32 = arith.constant 0 : i32
    %c0_i32_0 = arith.constant 0 : i32
    %c0_i32_1 = arith.constant 0 : i32
    return %c0_i32, %c0_i32_0 : i32, i32
  }
  func.func @transform_2(%arg0: i32) -> (i32, i32) {
    %c0_i32 = arith.constant 0 : i32
    %c0_i32_0 = arith.constant 0 : i32
    %c0_i32_1 = arith.constant 0 : i32
    return %c0_i32, %c0_i32_0 : i32, i32
  }
  func.func @transform_3(%arg0: i32) -> (i32, i32, i32) {
    %c0_i32 = arith.constant 0 : i32
    %c0_i32_0 = arith.constant 0 : i32
    %c0_i32_1 = arith.constant 0 : i32
    return %arg0, %c0_i32, %c0_i32_0 : i32, i32, i32
  }
}

</mosaic_0001>

<llo_original>
// kernel: pallas_forward.1
$region0: #{pallas_forward.1}
  #allocation0 [shape = 'u32[]', space=smem, size = 0x4, offset = 0x4, fixed_abs, tag = 'smem constant byte address 0x4 - core index']
  #allocation1 [shape = 'u32[144,128]{1,0:T(1,128)}', space=vmem, size = 0x12000, scoped, tag = 'internal scratch']
  %s0 = inlined_call_operand.vmem [shape: f32[2,8,18], index: 0, kind: input, shape index: {}]
  %s1 = inlined_call_operand.vmem [shape: f32[608,32], index: 1, kind: input, shape index: {}]
  %s2 = inlined_call_operand.vmem [shape: f32[120,128], index: 2, kind: input, shape index: {}]
  %s3 = inlined_call_operand.hbm [shape: f32[2,8,128], index: 3, kind: output, shape index: {}]
  %s4 = sld [smem:[#allocation0]]
  $region45: #{pallas_forward.1} parent=0
    _
  %s6 = ssub.s32 1, %s4
  %s7 = scalar_select 0, %s6, %s4
  $region1: #{pallas_forward.1} parent=0
    #allocation2 [shape = 'u8[8192]{0}', space=vmem, size = 0x2000, scoped, tag = 'output window, operand 0']
    #allocation3 [shape = 's32[2]{0}', space=sflag, size = 0x8, scoped, tag = 'scoped memory for pallas_forward.1']
    %8 = vsyncpa [#allocation3], 0
    %s9 = scalar_lea.sflag [#allocation3], 1
    %10 = vsyncpa %s9, 0
    loop: start=0, step=1, limit=4
    $region2: #{pallas_forward.1} parent=1 // loop_pre_header
      _
    $region3: #{pallas_forward.1} parent=1 // loop_header
      %s12 = sphi 0, %s16
      %p13 = scmp.ge.s32.totalorder %s12, 4
      %s22 = sphi 0, %s24
      %s25 = sphi 0, %s22
      %s26 = sphi 0, %s25
      %s42 = sphi 0, %s26
      %s46 = sphi 0, %s46
      %s48 = sphi 0, %s46
      %s49 = sphi 0, %s48
      %s63 = sphi 0, %s49
      %s67 = sphi 0, %s67
      %s69 = sphi 0, %s67
      %s70 = sphi 0, %s69
      %s84 = sphi 0, %s70
      %s90 = sphi 0, %s92
      %s93 = sphi 0, %s90
      %s94 = sphi 0, %s93
      %s110 = sphi 0, %s94
    $region4: #{pallas_forward.1} parent=1 // loop_header_branch
      %15 = sbr.rel (%p13) target = $region8
    $region5: #{pallas_forward.1} parent=1 // loop_body
      %s17 = ssub.s32 %s12, 1
      %s18 = ssub.s32 %s12, 2
      %s19 = sadd.s32 %s12, 1
      %s20 = ssub.s32 %s12, %s19
      %p21 = scmp.eq.s32.totalorder %s20, 0
      %s23 = sadd.s32 %s22, 1
      %s24 = scalar_select %p21, %s22, %s23
      %p27 = pneg %p21
      %p28 = scmp.eq.s32.totalorder %s12, 1
      %p29 = por %p27, %p28
      %p30 = scmp.ne.s32.totalorder %s22, %s25
      %p31 = scmp.eq.s32.totalorder %s12, 0
      %p32 = por %p30, %p31
      %p33 = scmp.ne.s32.totalorder %s22, %s25
      %p34 = scmp.eq.s32.totalorder %s17, 1
      %p35 = por %p33, %p34
      %p36 = scmp.ne.s32.totalorder %s25, %s26
      %p37 = scmp.eq.s32.totalorder %s17, 0
      %p38 = por %p36, %p37
      %p39 = scmp.ne.s32.totalorder %s25, %s26
      %p40 = scmp.eq.s32.totalorder %s18, 1
      %p41 = por %p39, %p40
      %p43 = scmp.ne.s32.totalorder %s26, %s42
      %p44 = scmp.eq.s32.totalorder %s18, 0
      %p45 = por %p43, %p44
      %s47 = sadd.s32 %s46, 1
      %p50 = scmp.eq.s32.totalorder %s12, 1
      %p51 = scmp.ne.s32.totalorder %s46, %s48
      %p52 = scmp.eq.s32.totalorder %s12, 0
      %p53 = por %p51, %p52
      %p54 = scmp.ne.s32.totalorder %s46, %s48
      %p55 = scmp.eq.s32.totalorder %s17, 1
      %p56 = por %p54, %p55
      %p57 = scmp.ne.s32.totalorder %s48, %s49
      %p58 = scmp.eq.s32.totalorder %s17, 0
      %p59 = por %p57, %p58
      %p60 = scmp.ne.s32.totalorder %s48, %s49
      %p61 = scmp.eq.s32.totalorder %s18, 1
      %p62 = por %p60, %p61
      %p64 = scmp.ne.s32.totalorder %s49, %s63
      %p65 = scmp.eq.s32.totalorder %s18, 0
      %p66 = por %p64, %p65
      %s68 = sadd.s32 %s67, 1
      %p71 = scmp.eq.s32.totalorder %s12, 1
      %p72 = scmp.ne.s32.totalorder %s67, %s69
      %p73 = scmp.eq.s32.totalorder %s12, 0
      %p74 = por %p72, %p73
      %p75 = scmp.ne.s32.totalorder %s67, %s69
      %p76 = scmp.eq.s32.totalorder %s17, 1
      %p77 = por %p75, %p76
      %p78 = scmp.ne.s32.totalorder %s69, %s70
      %p79 = scmp.eq.s32.totalorder %s17, 0
      %p80 = por %p78, %p79
      %p81 = scmp.ne.s32.totalorder %s69, %s70
      %p82 = scmp.eq.s32.totalorder %s18, 1
      %p83 = por %p81, %p82
      %p85 = scmp.ne.s32.totalorder %s70, %s84
      %p86 = scmp.eq.s32.totalorder %s18, 0
      %p87 = por %p85, %p86
      %s88 = ssub.s32 %s12, %s19
      %p89 = scmp.eq.s32.totalorder %s88, 0
      %s91 = sadd.s32 %s90, 1
      %s92 = scalar_select %p89, %s90, %s91
      %p95 = pneg %p89
      %p96 = scmp.eq.s32.totalorder %s12, 1
      %p97 = por %p95, %p96
      %p98 = scmp.ne.s32.totalorder %s90, %s93
      %p99 = scmp.eq.s32.totalorder %s12, 0
      %p100 = por %p98, %p99
      %p101 = scmp.ne.s32.totalorder %s90, %s93
      %p102 = scmp.eq.s32.totalorder %s17, 1
      %p103 = por %p101, %p102
      %p104 = scmp.ne.s32.totalorder %s93, %s94
      %p105 = scmp.eq.s32.totalorder %s17, 0
      %p106 = por %p104, %p105
      %p107 = scmp.ne.s32.totalorder %s93, %s94
      %p108 = scmp.eq.s32.totalorder %s18, 1
      %p109 = por %p107, %p108
      %p111 = scmp.ne.s32.totalorder %s94, %s110
      %p112 = scmp.eq.s32.totalorder %s18, 0
      %p113 = por %p111, %p112
      %p114 = scmp.le.s32.totalorder 1, %s12
      %p115 = scmp.lt.s32.totalorder %s12, 3
      %p116 = pnand %p114, %p115
      %p117 = pneg %p116
      // Predicated region
      $region9: #{pallas_forward.1} parent=5 // pred_check
        _
      $region10: #{pallas_forward.1} parent=5 // pred_check_branch
        %119 = sbr.rel (%p116) target = $region12
      $region11: #{pallas_forward.1} parent=5 // pred_region
        %s120 = ssub.s32 %s12, 1
        // Predicated region
        $region13: #{pallas_forward.1} parent=11 // pred_check
          %p121 = pneg %p59
        $region14: #{pallas_forward.1} parent=11 // pred_check_branch
          %123 = sbr.rel (%p121) target = $region16
        $region15: #{pallas_forward.1} parent=11 // pred_region
          _
        $region16: #{pallas_forward.1} parent=11 // pred_fallthru
          _
        // Predicated region
        $region17: #{pallas_forward.1} parent=11 // pred_check
          %p124 = pneg %p80
        $region18: #{pallas_forward.1} parent=11 // pred_check_branch
          %126 = sbr.rel (%p124) target = $region20
        $region19: #{pallas_forward.1} parent=11 // pred_region
          _
        $region20: #{pallas_forward.1} parent=11 // pred_fallthru
          _
      $region12: #{pallas_forward.1} parent=5 // pred_fallthru
        _
      %p127 = scmp.lt.s32.totalorder %s12, 2
      // Predicated region
      $region21: #{pallas_forward.1} parent=5 // pred_check
        %p128 = pneg %p127
      $region22: #{pallas_forward.1} parent=5 // pred_check_branch
        %130 = sbr.rel (%p128) target = $region24
      $region23: #{pallas_forward.1} parent=5 // pred_region
        // Predicated region
        $region25: #{pallas_forward.1} parent=23 // pred_check
          %p131 = pneg %p32
        $region26: #{pallas_forward.1} parent=23 // pred_check_branch
          %133 = sbr.rel (%p131) target = $region28
        $region27: #{pallas_forward.1} parent=23 // pred_region
          %p134 = scmp.lt.s32.totalorder %s12, 1
          %s135 = scalar_select %p134, %s12, 1
          %s136 = smul.addr %s135, 8
          %s137 = scalar_lea.vmem %s0, %s136
        $region28: #{pallas_forward.1} parent=23 // pred_fallthru
          _
      $region24: #{pallas_forward.1} parent=5 // pred_fallthru
        _
      %p138 = scmp.le.s32.totalorder 1, %s12
      %p139 = scmp.lt.s32.totalorder %s12, 3
      %p140 = pnand %p138, %p139
      %p141 = pneg %p140
      // Predicated region
      $region29: #{pallas_forward.1} parent=5 // pred_check
        _
      $region30: #{pallas_forward.1} parent=5 // pred_check_branch
        %143 = sbr.rel (%p140) target = $region32
      $region31: #{pallas_forward.1} parent=5 // pred_region
        %s144 = ssub.s32 %s12, 1
        %p145 = scmp.lt.s32.totalorder %s17, 1
        %s146 = scalar_select %p145, %s17, 1
        %s147 = smul.addr %s146, 8
        %s148 = scalar_lea.vmem %s0, %s147
        %p149 = pneg %p38
        %p150 = pneg %p35
        %p151 = pneg %p59
        %p152 = pneg %p56
        %p153 = pneg %p80
        %p154 = pneg %p77
        %p155 = pneg %p106
        %p156 = pneg %p103
        %s157 = sand.u32 %s93, 1
        %s158 = scalar_lea.sflag [#allocation3], %s157
        %s159 = sand.u32 %s93, 1
        %s160 = smul.addr %s159, 8
        %s161 = scalar_lea.vmem [#allocation2], %s160
        %p162 = scmp.lt.s32.totalorder %s17, 1
        %s163 = scalar_select %p162, %s17, 1
        %s164 = smul.addr %s163, 8
        %s165 = scalar_lea.vmem %s0, %s164
        %v166 = vld [vmem:[%s165] sm:$0xff]
        %v167 = vld [vmem:[%s1] sm:$0xff]
        %v168 = vld [vmem:[%s1 + $0x8] sm:$0xff]
        %v169 = vld [vmem:[%s1 + $0x10] sm:$0x3]
        %v170 = vld [vmem:[%s1 + $0x18] sm:$0xff]
        %v171 = vld [vmem:[%s1 + $0x20] sm:$0xff]
        %v172 = vld [vmem:[%s1 + $0x28] sm:$0xff]
        %v173 = vld [vmem:[%s1 + $0x30] sm:$0xff]
        %v174 = vld [vmem:[%s1 + $0x38] sm:$0xff]
        %vm175 = vcmask 146432
        %v177 = vsel %vm175, %v166, 0
        %vm179 = vcmask 1041408
        %v181 = vsel %vm179, %v169, 0
        %183 = vmatprep.subr.mxu0 0.0
        %184 = vmatpush1.msra.mxu0 %v167
        %185 = vmatprep.subr.mxu0 0.0
        %186 = vmatpush1.msra.mxu0 %v168
        %187 = vmatprep.subr.mxu0 0.0
        %188 = vmatpush1.msra.mxu0 %v181
        %189 = vmatprep.subr.mxu0 0.0
        %190 = vmatpush1.msra.mxu0 0.0
        %191 = vmatprep.subr.mxu0 0.0
        %192 = vmatpush1.msra.mxu0 0.0
        %193 = vmatprep.subr.mxu0 0.0
        %194 = vmatpush1.msra.mxu0 0.0
        %195 = vmatprep.subr.mxu0 0.0
        %196 = vmatpush1.msra.mxu0 0.0
        %197 = vmatprep.subr.mxu0 0.0
        %198 = vmatpush1.msra.mxu0 0.0
        %199 = vmatprep.subr.mxu0 0.0
        %200 = vmatpush1.msra.mxu0 0.0
        %201 = vmatprep.subr.mxu0 0.0
        %202 = vmatpush1.msra.mxu0 0.0
        %203 = vmatprep.subr.mxu0 0.0
        %204 = vmatpush1.msra.mxu0 0.0
        %205 = vmatprep.subr.mxu0 0.0
        %206 = vmatpush1.msra.mxu0 0.0
        %207 = vmatprep.subr.mxu0 0.0
        %208 = vmatpush1.msra.mxu0 0.0
        %209 = vmatprep.subr.mxu0 0.0
        %210 = vmatpush1.msra.mxu0 0.0
        %211 = vmatprep.subr.mxu0 0.0
        %212 = vmatpush1.msra.mxu0 0.0
        %213 = vmatprep.subr.mxu0 0.0
        %214 = vmatpush1.msra.mxu0 0.0
        %215 = vmatprep.subr.mxu0 0.0
        %216 = vmatpush1.msra.mxu0 0.0
        %217 = vmatprep.subr.mxu0 0.0
        %218 = vmatpush1.msra.mxu0 0.0
        %219 = vmatprep.subr.mxu0 0.0
        %220 = vmatpush1.msra.mxu0 0.0
        %221 = vmatprep.subr.mxu0 0.0
        %222 = vmatpush1.msra.mxu0 0.0
        %223 = vmatprep.subr.mxu0 0.0
        %224 = vmatpush1.msra.mxu0 0.0
        %225 = vmatprep.subr.mxu0 0.0
        %226 = vmatpush1.msra.mxu0 0.0
        %227 = vmatprep.subr.mxu0 0.0
        %228 = vmatpush1.msra.mxu0 0.0
        %229 = vmatprep.subr.mxu0 0.0
        %230 = vmatpush1.msra.mxu0 0.0
        %231 = vmatprep.subr.mxu0 0.0
        %232 = vmatpush1.msra.mxu0 0.0
        %233 = vmatprep.subr.mxu0 0.0
        %234 = vmatpush1.msra.mxu0 0.0
        %235 = vmatprep.subr.mxu0 0.0
        %236 = vmatpush1.msra.mxu0 0.0
        %237 = vmatprep.subr.mxu0 0.0
        %238 = vmatpush1.msra.mxu0 0.0
        %239 = vmatprep.subr.mxu0 0.0
        %240 = vmatpush1.msra.mxu0 0.0
        %241 = vmatprep.subr.mxu0 0.0
        %242 = vmatpush1.msra.mxu0 0.0
        %243 = vmatprep.subr.mxu0 0.0
        %244 = vmatpush1.msra.mxu0 0.0
        %245 = vmatprep.subr.mxu0 0.0
        %246 = vmatpush1.msra.mxu0 0.0
        %247 = vmatprep.mubr.f32.mxu0 0.0
        %248 = vmatmul.mubr.f32.gmra.mrb[0].mxu0 %v177
        %v249 = vpop.f32.mrb[0].mxu0
        %v250 = vadd.f32 %v170, %v249
        %v251 = vpop.f32.mrb[0].mxu0
        %252 = vdwg.mxu0
        %v253 = vld [vmem:[%s1 + $0x40] sm:$0xff]
        %v254 = vld [vmem:[%s1 + $0x48] sm:$0xff]
        %v255 = vld [vmem:[%s1 + $0x50] sm:$0xff]
        %v256 = vld [vmem:[%s1 + $0x58] sm:$0xff]
        %v257 = vld [vmem:[%s1 + $0x60] sm:$0xff]
        %v258 = vld [vmem:[%s1 + $0x68] sm:$0xff]
        %v259 = vld [vmem:[%s1 + $0x70] sm:$0xff]
        %v260 = vld [vmem:[%s1 + $0x78] sm:$0xff]
        %v261 = vld [vmem:[%s1 + $0x80] sm:$0xff]
        %v262 = vld [vmem:[%s1 + $0x88] sm:$0xff]
        %v263 = vld [vmem:[%s1 + $0x90] sm:$0xff]
        %v264 = vld [vmem:[%s1 + $0x98] sm:$0xff]
        %v265 = vld [vmem:[%s1 + $0xa0] sm:$0xff]
        %v266 = vld [vmem:[%s1 + $0xa8] sm:$0xff]
        %v267 = vld [vmem:[%s1 + $0xb0] sm:$0xff]
        %v268 = vld [vmem:[%s1 + $0xb8] sm:$0xff]
        %v269 = vld [vmem:[%s1 + $0xc0] sm:$0xff]
        %v270 = vld [vmem:[%s1 + $0xc8] sm:$0xff]
        %v271 = vld [vmem:[%s1 + $0xd0] sm:$0xff]
        %v272 = vld [vmem:[%s1 + $0xd8] sm:$0xff]
        %v273 = vld [vmem:[%s1 + $0xe0] sm:$0xff]
        %v274 = vld [vmem:[%s1 + $0xe8] sm:$0xff]
        %v275 = vld [vmem:[%s1 + $0xf0] sm:$0xff]
        %v276 = vld [vmem:[%s1 + $0xf8] sm:$0xff]
        %v277 = vld [vmem:[%s1 + $0x100] sm:$0xff]
        %v278 = vld [vmem:[%s1 + $0x108] sm:$0xff]
        %v279 = vld [vmem:[%s1 + $0x110] sm:$0xff]
        %v280 = vld [vmem:[%s1 + $0x118] sm:$0xff]
        %v281 = vld [vmem:[%s1 + $0x120] sm:$0xff]
        %v282 = vld [vmem:[%s1 + $0x128] sm:$0xff]
        %v283 = vld [vmem:[%s1 + $0x130] sm:$0xff]
        %v284 = vld [vmem:[%s1 + $0x138] sm:$0xff]
        %v285 = vld [vmem:[%s1 + $0x140] sm:$0xff]
        %v286 = vld [vmem:[%s1 + $0x148] sm:$0xff]
        %v287 = vld [vmem:[%s2 + $0x28] sm:$0xff]
        %v288 = vld [vmem:[%s2 + $0x30] sm:$0xff]
        %v289 = vld [vmem:[%s2 + $0x38] sm:$0xff]
        %v290 = vld [vmem:[%s2 + $0x40] sm:$0xff]
        %v291 = vld [vmem:[%s2 + $0x48] sm:$0x1]
        %v292 = vlaneseq
        %v293 = vshrl.u32 %v292, 7
        %v294 = vsub.s32 0, %v293
        %v295 = vrot.slane %v285, %v294
        %vm296 = vcmask 261120
        %v298 = vsel %vm296, %v250, 0
        %300 = vmatprep.subr.mxu0 0.0
        %301 = vmatpush1.msra.mxu0 %v253
        %302 = vmatprep.subr.mxu0 0.0
        %303 = vmatpush1.msra.mxu0 %v254
        %304 = vmatprep.subr.mxu0 0.0
        %305 = vmatpush1.msra.mxu0 %v255
        %306 = vmatprep.subr.mxu0 0.0
        %307 = vmatpush1.msra.mxu0 %v256
        %308 = vmatprep.subr.mxu0 0.0
        %309 = vmatpush1.msra.mxu0 0.0
        %310 = vmatprep.subr.mxu0 0.0
        %311 = vmatpush1.msra.mxu0 0.0
        %312 = vmatprep.subr.mxu0 0.0
        %313 = vmatpush1.msra.mxu0 0.0
        %314 = vmatprep.subr.mxu0 0.0
        %315 = vmatpush1.msra.mxu0 0.0
        %316 = vmatprep.subr.mxu0 0.0
        %317 = vmatpush1.msra.mxu0 0.0
        %318 = vmatprep.subr.mxu0 0.0
        %319 = vmatpush1.msra.mxu0 0.0
        %320 = vmatprep.subr.mxu0 0.0
        %321 = vmatpush1.msra.mxu0 0.0
        %322 = vmatprep.subr.mxu0 0.0
        %323 = vmatpush1.msra.mxu0 0.0
        %324 = vmatprep.subr.mxu0 0.0
        %325 = vmatpush1.msra.mxu0 0.0
        %326 = vmatprep.subr.mxu0 0.0
        %327 = vmatpush1.msra.mxu0 0.0
        %328 = vmatprep.subr.mxu0 0.0
        %329 = vmatpush1.msra.mxu0 0.0
        %330 = vmatprep.subr.mxu0 0.0
        %331 = vmatpush1.msra.mxu0 0.0
        %332 = vmatprep.subr.mxu0 0.0
        %333 = vmatpush1.msra.mxu0 0.0
        %334 = vmatprep.subr.mxu0 0.0
        %335 = vmatpush1.msra.mxu0 0.0
        %336 = vmatprep.subr.mxu0 0.0
        %337 = vmatpush1.msra.mxu0 0.0
        %338 = vmatprep.subr.mxu0 0.0
        %339 = vmatpush1.msra.mxu0 0.0
        %340 = vmatprep.subr.mxu0 0.0
        %341 = vmatpush1.msra.mxu0 0.0
        %342 = vmatprep.subr.mxu0 0.0
        %343 = vmatpush1.msra.mxu0 0.0
        %344 = vmatprep.subr.mxu0 0.0
        %345 = vmatpush1.msra.mxu0 0.0
        %346 = vmatprep.subr.mxu0 0.0
        %347 = vmatpush1.msra.mxu0 0.0
        %348 = vmatprep.subr.mxu0 0.0
        %349 = vmatpush1.msra.mxu0 0.0
        %350 = vmatprep.subr.mxu0 0.0
        %351 = vmatpush1.msra.mxu0 0.0
        %352 = vmatprep.subr.mxu0 0.0
        %353 = vmatpush1.msra.mxu0 0.0
        %354 = vmatprep.subr.mxu0 0.0
        %355 = vmatpush1.msra.mxu0 0.0
        %356 = vmatprep.subr.mxu0 0.0
        %357 = vmatpush1.msra.mxu0 0.0
        %358 = vmatprep.subr.mxu0 0.0
        %359 = vmatpush1.msra.mxu0 0.0
        %360 = vmatprep.subr.mxu0 0.0
        %361 = vmatpush1.msra.mxu0 0.0
        %362 = vmatprep.subr.mxu0 0.0
        %363 = vmatpush1.msra.mxu0 0.0
        %364 = vmatprep.mubr.f32.mxu0 0.0
        %365 = vmatmul.mubr.f32.gmra.mrb[0].mxu0 %v298
        %v366 = vpop.f32.mrb[0].mxu0
        %v367 = vadd.f32 %v295, %v366
        %v368 = vpop.f32.mrb[0].mxu0
        %369 = vdwg.mxu0
        %v370 = vlaneseq
        %v371 = vshrl.u32 %v370, 7
        %v372 = vsub.s32 1, %v371
        %v373 = vrot.slane %v285, %v372
        %374 = vmatprep.subr.mxu0 0.0
        %375 = vmatpush1.msra.mxu0 %v257
        %376 = vmatprep.subr.mxu0 0.0
        %377 = vmatpush1.msra.mxu0 %v258
        %378 = vmatprep.subr.mxu0 0.0
        %379 = vmatpush1.msra.mxu0 %v259
        %380 = vmatprep.subr.mxu0 0.0
        %381 = vmatpush1.msra.mxu0 %v260
        %382 = vmatprep.subr.mxu0 0.0
        %383 = vmatpush1.msra.mxu0 0.0
        %384 = vmatprep.subr.mxu0 0.0
        %385 = vmatpush1.msra.mxu0 0.0
        %386 = vmatprep.subr.mxu0 0.0
        %387 = vmatpush1.msra.mxu0 0.0
        %388 = vmatprep.subr.mxu0 0.0
        %389 = vmatpush1.msra.mxu0 0.0
        %390 = vmatprep.subr.mxu0 0.0
        %391 = vmatpush1.msra.mxu0 0.0
        %392 = vmatprep.subr.mxu0 0.0
        %393 = vmatpush1.msra.mxu0 0.0
        %394 = vmatprep.subr.mxu0 0.0
        %395 = vmatpush1.msra.mxu0 0.0
        %396 = vmatprep.subr.mxu0 0.0
        %397 = vmatpush1.msra.mxu0 0.0
        %398 = vmatprep.subr.mxu0 0.0
        %399 = vmatpush1.msra.mxu0 0.0
        %400 = vmatprep.subr.mxu0 0.0
        %401 = vmatpush1.msra.mxu0 0.0
        %402 = vmatprep.subr.mxu0 0.0
        %403 = vmatpush1.msra.mxu0 0.0
        %404 = vmatprep.subr.mxu0 0.0
        %405 = vmatpush1.msra.mxu0 0.0
        %406 = vmatprep.subr.mxu0 0.0
        %407 = vmatpush1.msra.mxu0 0.0
        %408 = vmatprep.subr.mxu0 0.0
        %409 = vmatpush1.msra.mxu0 0.0
        %410 = vmatprep.subr.mxu0 0.0
        %411 = vmatpush1.msra.mxu0 0.0
        %412 = vmatprep.subr.mxu0 0.0
        %413 = vmatpush1.msra.mxu0 0.0
        %414 = vmatprep.subr.mxu0 0.0
        %415 = vmatpush1.msra.mxu0 0.0
        %416 = vmatprep.subr.mxu0 0.0
        %417 = vmatpush1.msra.mxu0 0.0
        %418 = vmatprep.subr.mxu0 0.0
        %419 = vmatpush1.msra.mxu0 0.0
        %420 = vmatprep.subr.mxu0 0.0
        %421 = vmatpush1.msra.mxu0 0.0
        %422 = vmatprep.subr.mxu0 0.0
        %423 = vmatpush1.msra.mxu0 0.0
        %424 = vmatprep.subr.mxu0 0.0
        %425 = vmatpush1.msra.mxu0 0.0
        %426 = vmatprep.subr.mxu0 0.0
        %427 = vmatpush1.msra.mxu0 0.0
        %428 = vmatprep.subr.mxu0 0.0
        %429 = vmatpush1.msra.mxu0 0.0
        %430 = vmatprep.subr.mxu0 0.0
        %431 = vmatpush1.msra.mxu0 0.0
        %432 = vmatprep.subr.mxu0 0.0
        %433 = vmatpush1.msra.mxu0 0.0
        %434 = vmatprep.subr.mxu0 0.0
        %435 = vmatpush1.msra.mxu0 0.0
        %436 = vmatprep.subr.mxu0 0.0
        %437 = vmatpush1.msra.mxu0 0.0
        %438 = vmatprep.mubr.f32.mxu0 0.0
        %439 = vmatmul.mubr.f32.gmra.mrb[0].mxu0 %v298
        %v440 = vpop.f32.mrb[0].mxu0
        %v441 = vadd.f32 %v373, %v440
        %v442 = vpop.f32.mrb[0].mxu0
        %443 = vdwg.mxu0
        %v444 = vlaneseq
        %v445 = vshrl.u32 %v444, 7
        %v446 = vsub.s32 2, %v445
        %v447 = vrot.slane %v285, %v446
        %448 = vmatprep.subr.mxu0 0.0
        %449 = vmatpush1.msra.mxu0 %v261
        %450 = vmatprep.subr.mxu0 0.0
        %451 = vmatpush1.msra.mxu0 %v262
        %452 = vmatprep.subr.mxu0 0.0
        %453 = vmatpush1.msra.mxu0 %v263
        %454 = vmatprep.subr.mxu0 0.0
        %455 = vmatpush1.msra.mxu0 %v264
        %456 = vmatprep.subr.mxu0 0.0
        %457 = vmatpush1.msra.mxu0 0.0
        %458 = vmatprep.subr.mxu0 0.0
        %459 = vmatpush1.msra.mxu0 0.0
        %460 = vmatprep.subr.mxu0 0.0
        %461 = vmatpush1.msra.mxu0 0.0
        %462 = vmatprep.subr.mxu0 0.0
        %463 = vmatpush1.msra.mxu0 0.0
        %464 = vmatprep.subr.mxu0 0.0
        %465 = vmatpush1.msra.mxu0 0.0
        %466 = vmatprep.subr.mxu0 0.0
        %467 = vmatpush1.msra.mxu0 0.0
        %468 = vmatprep.subr.mxu0 0.0
        %469 = vmatpush1.msra.mxu0 0.0
        %470 = vmatprep.subr.mxu0 0.0
        %471 = vmatpush1.msra.mxu0 0.0
        %472 = vmatprep.subr.mxu0 0.0
        %473 = vmatpush1.msra.mxu0 0.0
        %474 = vmatprep.subr.mxu0 0.0
        %475 = vmatpush1.msra.mxu0 0.0
        %476 = vmatprep.subr.mxu0 0.0
        %477 = vmatpush1.msra.mxu0 0.0
        %478 = vmatprep.subr.mxu0 0.0
        %479 = vmatpush1.msra.mxu0 0.0
        %480 = vmatprep.subr.mxu0 0.0
        %481 = vmatpush1.msra.mxu0 0.0
        %482 = vmatprep.subr.mxu0 0.0
        %483 = vmatpush1.msra.mxu0 0.0
        %484 = vmatprep.subr.mxu0 0.0
        %485 = vmatpush1.msra.mxu0 0.0
        %486 = vmatprep.subr.mxu0 0.0
        %487 = vmatpush1.msra.mxu0 0.0
        %488 = vmatprep.subr.mxu0 0.0
        %489 = vmatpush1.msra.mxu0 0.0
        %490 = vmatprep.subr.mxu0 0.0
        %491 = vmatpush1.msra.mxu0 0.0
        %492 = vmatprep.subr.mxu0 0.0
        %493 = vmatpush1.msra.mxu0 0.0
        %494 = vmatprep.subr.mxu0 0.0
        %495 = vmatpush1.msra.mxu0 0.0
        %496 = vmatprep.subr.mxu0 0.0
        %497 = vmatpush1.msra.mxu0 0.0
        %498 = vmatprep.subr.mxu0 0.0
        %499 = vmatpush1.msra.mxu0 0.0
        %500 = vmatprep.subr.mxu0 0.0
        %501 = vmatpush1.msra.mxu0 0.0
        %502 = vmatprep.subr.mxu0 0.0
        %503 = vmatpush1.msra.mxu0 0.0
        %504 = vmatprep.subr.mxu0 0.0
        %505 = vmatpush1.msra.mxu0 0.0
        %506 = vmatprep.subr.mxu0 0.0
        %507 = vmatpush1.msra.mxu0 0.0
        %508 = vmatprep.subr.mxu0 0.0
        %509 = vmatpush1.msra.mxu0 0.0
        %510 = vmatprep.subr.mxu0 0.0
        %511 = vmatpush1.msra.mxu0 0.0
        %512 = vmatprep.mubr.f32.mxu0 0.0
        %513 = vmatmul.mubr.f32.gmra.mrb[0].mxu0 %v298
        %v514 = vpop.f32.mrb[0].mxu0
        %v515 = vadd.f32 %v447, %v514
        %v516 = vpop.f32.mrb[0].mxu0
        %517 = vdwg.mxu0
        %v518 = vmul.f32 %v367, %v171
        %v519 = vmul.f32 %v367, %v172
        %v520 = vmul.f32 %v367, %v173
        %v521 = vmul.f32 %v367, %v174
        %v523 = vsel %vm296, %v518, 0
        %v526 = vsel %vm296, %v519, 0
        %v529 = vsel %vm296, %v520, 0
        %v532 = vsel %vm296, %v521, 0
        %v535 = vsel %vm296, %v441, 0
        %537 = vmatprep.subr.mxu0 0.0
        %538 = vmatpush1.xpose.msra.mxu0 %v535
        %539 = vmatprep.subr.mxu0 0.0
        %540 = vmatpush1.xpose.msra.mxu0 0.0
        %541 = vmatprep.subr.mxu0 0.0
        %542 = vmatpush1.xpose.msra.mxu0 0.0
        %543 = vmatprep.subr.mxu0 0.0
        %544 = vmatpush1.xpose.msra.mxu0 0.0
        %545 = vmatprep.subr.mxu0 0.0
        %546 = vmatpush1.xpose.msra.mxu0 0.0
        %547 = vmatprep.subr.mxu0 0.0
        %548 = vmatpush1.xpose.msra.mxu0 0.0
        %549 = vmatprep.subr.mxu0 0.0
        %550 = vmatpush1.xpose.msra.mxu0 0.0
        %551 = vmatprep.subr.mxu0 0.0
        %552 = vmatpush1.xpose.msra.mxu0 0.0
        %553 = vmatprep.subr.mxu0 0.0
        %554 = vmatpush1.xpose.msra.mxu0 0.0
        %555 = vmatprep.subr.mxu0 0.0
        %556 = vmatpush1.xpose.msra.mxu0 0.0
        %557 = vmatprep.subr.mxu0 0.0
        %558 = vmatpush1.xpose.msra.mxu0 0.0
        %559 = vmatprep.subr.mxu0 0.0
        %560 = vmatpush1.xpose.msra.mxu0 0.0
        %561 = vmatprep.subr.mxu0 0.0
        %562 = vmatpush1.xpose.msra.mxu0 0.0
        %563 = vmatprep.subr.mxu0 0.0
        %564 = vmatpush1.xpose.msra.mxu0 0.0
        %565 = vmatprep.subr.mxu0 0.0
        %566 = vmatpush1.xpose.msra.mxu0 0.0
        %567 = vmatprep.subr.mxu0 0.0
        %568 = vmatpush1.xpose.msra.mxu0 0.0
        %569 = vmatprep.subr.mxu0 0.0
        %570 = vmatpush1.xpose.msra.mxu0 0.0
        %571 = vmatprep.subr.mxu0 0.0
        %572 = vmatpush1.xpose.msra.mxu0 0.0
        %573 = vmatprep.subr.mxu0 0.0
        %574 = vmatpush1.xpose.msra.mxu0 0.0
        %575 = vmatprep.subr.mxu0 0.0
        %576 = vmatpush1.xpose.msra.mxu0 0.0
        %577 = vmatprep.subr.mxu0 0.0
        %578 = vmatpush1.xpose.msra.mxu0 0.0
        %579 = vmatprep.subr.mxu0 0.0
        %580 = vmatpush1.xpose.msra.mxu0 0.0
        %581 = vmatprep.subr.mxu0 0.0
        %582 = vmatpush1.xpose.msra.mxu0 0.0
        %583 = vmatprep.subr.mxu0 0.0
        %584 = vmatpush1.xpose.msra.mxu0 0.0
        %585 = vmatprep.subr.mxu0 0.0
        %586 = vmatpush1.xpose.msra.mxu0 0.0
        %587 = vmatprep.subr.mxu0 0.0
        %588 = vmatpush1.xpose.msra.mxu0 0.0
        %589 = vmatprep.subr.mxu0 0.0
        %590 = vmatpush1.xpose.msra.mxu0 0.0
        %591 = vmatprep.subr.mxu0 0.0
        %592 = vmatpush1.xpose.msra.mxu0 0.0
        %593 = vmatprep.subr.mxu0 0.0
        %594 = vmatpush1.xpose.msra.mxu0 0.0
        %595 = vmatprep.subr.mxu0 0.0
        %596 = vmatpush1.xpose.msra.mxu0 0.0
        %597 = vmatprep.subr.mxu0 0.0
        %598 = vmatpush1.xpose.msra.mxu0 0.0
        %599 = vmatprep.subr.mxu0 0.0
        %600 = vmatpush1.xpose.msra.mxu0 0.0
        %601 = vmatprep.mubr.f32.mxu0 0.0
        %602 = vmatmul.mubr.f32.gmra.mrb[0].mxu0 %v523
        %v603 = vpop.f32.mrb[0].mxu0
        %v604 = vadd.f32 0.0, %v603
        %v605 = vpop.f32.mrb[0].mxu0
        %606 = vmatprep.mubr.f32.mxu0 0.0
        %607 = vmatmul.mubr.f32.gmra.mrb[0].mxu0 %v526
        %v608 = vpop.f32.mrb[0].mxu0
        %v609 = vadd.f32 0.0, %v608
        %v610 = vpop.f32.mrb[0].mxu0
        %611 = vmatprep.mubr.f32.mxu0 0.0
        %612 = vmatmul.mubr.f32.gmra.mrb[0].mxu0 %v529
        %v613 = vpop.f32.mrb[0].mxu0
        %v614 = vadd.f32 0.0, %v613
        %v615 = vpop.f32.mrb[0].mxu0
        %616 = vmatprep.mubr.f32.mxu0 0.0
        %617 = vmatmul.mubr.f32.gmra.mrb[0].mxu0 %v532
        %v618 = vpop.f32.mrb[0].mxu0
        %v619 = vadd.f32 0.0, %v618
        %v620 = vpop.f32.mrb[0].mxu0
        %621 = vdwg.mxu0
        %vm622 = vcmask 64512
        %v623 = vsel %vm622, %v604, -inf
        %624 = vmax.xlane.f32.xlu0 %v623
        %v625 = vpop.xlane.xlu0 %624
        %v626 = vsel %vm622, %v609, -inf
        %627 = vmax.xlane.f32.xlu0 %v626
        %v628 = vpop.xlane.xlu0 %627
        %v629 = vsel %vm622, %v614, -inf
        %630 = vmax.xlane.f32.xlu0 %v629
        %v631 = vpop.xlane.xlu0 %630
        %v632 = vsel %vm622, %v619, -inf
        %633 = vmax.xlane.f32.xlu0 %v632
        %v634 = vpop.xlane.xlu0 %633
        %v635 = vsub.f32 %v604, %v625
        %v636 = vsub.f32 %v609, %v628
        %v637 = vsub.f32 %v614, %v631
        %v638 = vsub.f32 %v619, %v634
        %v639 = vmul.f32 %v635, 1.442695
        %v640 = vpow.pop %v639
        %v641 = vmul.f32 %v636, 1.442695
        %v642 = vpow.pop %v641
        %v643 = vmul.f32 %v637, 1.442695
        %v644 = vpow.pop %v643
        %v645 = vmul.f32 %v638, 1.442695
        %v646 = vpow.pop %v645
        %v647 = vsel %vm622, %v640, 0.0
        %648 = vadd.xlane.f32.xlu0 %v647
        %v649 = vpop.xlane.xlu0 %648
        %v650 = vsel %vm622, %v642, 0.0
        %651 = vadd.xlane.f32.xlu0 %v650
        %v652 = vpop.xlane.xlu0 %651
        %v653 = vsel %vm622, %v644, 0.0
        %654 = vadd.xlane.f32.xlu0 %v653
        %v655 = vpop.xlane.xlu0 %654
        %v656 = vsel %vm622, %v646, 0.0
        %657 = vadd.xlane.f32.xlu0 %v656
        %v658 = vpop.xlane.xlu0 %657
        %v659 = vrcp.pop %v649
        %v660 = vrcp.pop %v652
        %v661 = vrcp.pop %v655
        %v662 = vrcp.pop %v658
        %v663 = vmul.f32 %v640, %v659
        %v664 = vmul.f32 %v642, %v660
        %v665 = vmul.f32 %v644, %v661
        %v666 = vmul.f32 %v646, %v662
        %v668 = vsel %vm622, %v663, 0
        %v671 = vsel %vm622, %v664, 0
        %v674 = vsel %vm622, %v665, 0
        %v677 = vsel %vm622, %v666, 0
        %679 = vmatprep.subr.mxu0 0.0
        %680 = vmatpush1.msra.mxu0 %v515
        %681 = vmatprep.subr.mxu0 0.0
        %682 = vmatpush1.msra.mxu0 0.0
        %683 = vmatprep.subr.mxu0 0.0
        %684 = vmatpush1.msra.mxu0 0.0
        %685 = vmatprep.subr.mxu0 0.0
        %686 = vmatpush1.msra.mxu0 0.0
        %687 = vmatprep.subr.mxu0 0.0
        %688 = vmatpush1.msra.mxu0 0.0
        %689 = vmatprep.subr.mxu0 0.0
        %690 = vmatpush1.msra.mxu0 0.0
        %691 = vmatprep.subr.mxu0 0.0
        %692 = vmatpush1.msra.mxu0 0.0
        %693 = vmatprep.subr.mxu0 0.0
        %694 = vmatpush1.msra.mxu0 0.0
        %695 = vmatprep.subr.mxu0 0.0
        %696 = vmatpush1.msra.mxu0 0.0
        %697 = vmatprep.subr.mxu0 0.0
        %698 = vmatpush1.msra.mxu0 0.0
        %699 = vmatprep.subr.mxu0 0.0
        %700 = vmatpush1.msra.mxu0 0.0
        %701 = vmatprep.subr.mxu0 0.0
        %702 = vmatpush1.msra.mxu0 0.0
        %703 = vmatprep.subr.mxu0 0.0
        %704 = vmatpush1.msra.mxu0 0.0
        %705 = vmatprep.subr.mxu0 0.0
        %706 = vmatpush1.msra.mxu0 0.0
        %707 = vmatprep.subr.mxu0 0.0
        %708 = vmatpush1.msra.mxu0 0.0
        %709 = vmatprep.subr.mxu0 0.0
        %710 = vmatpush1.msra.mxu0 0.0
        %711 = vmatprep.subr.mxu0 0.0
        %712 = vmatpush1.msra.mxu0 0.0
        %713 = vmatprep.subr.mxu0 0.0
        %714 = vmatpush1.msra.mxu0 0.0
        %715 = vmatprep.subr.mxu0 0.0
        %716 = vmatpush1.msra.mxu0 0.0
        %717 = vmatprep.subr.mxu0 0.0
        %718 = vmatpush1.msra.mxu0 0.0
        %719 = vmatprep.subr.mxu0 0.0
        %720 = vmatpush1.msra.mxu0 0.0
        %721 = vmatprep.subr.mxu0 0.0
        %722 = vmatpush1.msra.mxu0 0.0
        %723 = vmatprep.subr.mxu0 0.0
        %724 = vmatpush1.msra.mxu0 0.0
        %725 = vmatprep.subr.mxu0 0.0
        %726 = vmatpush1.msra.mxu0 0.0
        %727 = vmatprep.subr.mxu0 0.0
        %728 = vmatpush1.msra.mxu0 0.0
        %729 = vmatprep.subr.mxu0 0.0
        %730 = vmatpush1.msra.mxu0 0.0
        %731 = vmatprep.subr.mxu0 0.0
        %732 = vmatpush1.msra.mxu0 0.0
        %733 = vmatprep.subr.mxu0 0.0
        %734 = vmatpush1.msra.mxu0 0.0
        %735 = vmatprep.subr.mxu0 0.0
        %736 = vmatpush1.msra.mxu0 0.0
        %737 = vmatprep.subr.mxu0 0.0
        %738 = vmatpush1.msra.mxu0 0.0
        %739 = vmatprep.subr.mxu0 0.0
        %740 = vmatpush1.msra.mxu0 0.0
        %741 = vmatprep.subr.mxu0 0.0
        %742 = vmatpush1.msra.mxu0 0.0
        %743 = vmatprep.mubr.f32.mxu0 0.0
        %744 = vmatmul.mubr.f32.gmra.mrb[0].mxu0 %v668
        %v745 = vpop.f32.mrb[0].mxu0
        %v746 = vadd.f32 0.0, %v745
        %v747 = vpop.f32.mrb[0].mxu0
        %748 = vmatprep.mubr.f32.mxu0 0.0
        %749 = vmatmul.mubr.f32.gmra.mrb[0].mxu0 %v671
        %v750 = vpop.f32.mrb[0].mxu0
        %v751 = vadd.f32 0.0, %v750
        %v752 = vpop.f32.mrb[0].mxu0
        %753 = vmatprep.mubr.f32.mxu0 0.0
        %754 = vmatmul.mubr.f32.gmra.mrb[0].mxu0 %v674
        %v755 = vpop.f32.mrb[0].mxu0
        %v756 = vadd.f32 0.0, %v755
        %v757 = vpop.f32.mrb[0].mxu0
        %758 = vmatprep.mubr.f32.mxu0 0.0
        %759 = vmatmul.mubr.f32.gmra.mrb[0].mxu0 %v677
        %v760 = vpop.f32.mrb[0].mxu0
        %v761 = vadd.f32 0.0, %v760
        %v762 = vpop.f32.mrb[0].mxu0
        %763 = vdwg.mxu0
        %v764 = vmul.f32 %v746, %v171
        %v765 = vmul.f32 %v751, %v172
        %v766 = vmul.f32 %v756, %v173
        %v767 = vmul.f32 %v761, %v174
        %v768 = vadd.f32 %v764, %v765
        %v769 = vadd.f32 %v768, %v766
        %v770 = vadd.f32 %v769, %v767
        %v771 = vlaneseq
        %v772 = vshrl.u32 %v771, 7
        %v773 = vsub.s32 3, %v772
        %v774 = vrot.slane %v285, %v773
        %v776 = vsel %vm296, %v770, 0
        %778 = vmatprep.subr.mxu0 0.0
        %779 = vmatpush1.msra.mxu0 %v265
        %780 = vmatprep.subr.mxu0 0.0
        %781 = vmatpush1.msra.mxu0 %v266
        %782 = vmatprep.subr.mxu0 0.0
        %783 = vmatpush1.msra.mxu0 %v267
        %784 = vmatprep.subr.mxu0 0.0
        %785 = vmatpush1.msra.mxu0 %v268
        %786 = vmatprep.subr.mxu0 0.0
        %787 = vmatpush1.msra.mxu0 0.0
        %788 = vmatprep.subr.mxu0 0.0
        %789 = vmatpush1.msra.mxu0 0.0
        %790 = vmatprep.subr.mxu0 0.0
        %791 = vmatpush1.msra.mxu0 0.0
        %792 = vmatprep.subr.mxu0 0.0
        %793 = vmatpush1.msra.mxu0 0.0
        %794 = vmatprep.subr.mxu0 0.0
        %795 = vmatpush1.msra.mxu0 0.0
        %796 = vmatprep.subr.mxu0 0.0
        %797 = vmatpush1.msra.mxu0 0.0
        %798 = vmatprep.subr.mxu0 0.0
        %799 = vmatpush1.msra.mxu0 0.0
        %800 = vmatprep.subr.mxu0 0.0
        %801 = vmatpush1.msra.mxu0 0.0
        %802 = vmatprep.subr.mxu0 0.0
        %803 = vmatpush1.msra.mxu0 0.0
        %804 = vmatprep.subr.mxu0 0.0
        %805 = vmatpush1.msra.mxu0 0.0
        %806 = vmatprep.subr.mxu0 0.0
        %807 = vmatpush1.msra.mxu0 0.0
        %808 = vmatprep.subr.mxu0 0.0
        %809 = vmatpush1.msra.mxu0 0.0
        %810 = vmatprep.subr.mxu0 0.0
        %811 = vmatpush1.msra.mxu0 0.0
        %812 = vmatprep.subr.mxu0 0.0
        %813 = vmatpush1.msra.mxu0 0.0
        %814 = vmatprep.subr.mxu0 0.0
        %815 = vmatpush1.msra.mxu0 0.0
        %816 = vmatprep.subr.mxu0 0.0
        %817 = vmatpush1.msra.mxu0 0.0
        %818 = vmatprep.subr.mxu0 0.0
        %819 = vmatpush1.msra.mxu0 0.0
        %820 = vmatprep.subr.mxu0 0.0
        %821 = vmatpush1.msra.mxu0 0.0
        %822 = vmatprep.subr.mxu0 0.0
        %823 = vmatpush1.msra.mxu0 0.0
        %824 = vmatprep.subr.mxu0 0.0
        %825 = vmatpush1.msra.mxu0 0.0
        %826 = vmatprep.subr.mxu0 0.0
        %827 = vmatpush1.msra.mxu0 0.0
        %828 = vmatprep.subr.mxu0 0.0
        %829 = vmatpush1.msra.mxu0 0.0
        %830 = vmatprep.subr.mxu0 0.0
        %831 = vmatpush1.msra.mxu0 0.0
        %832 = vmatprep.subr.mxu0 0.0
        %833 = vmatpush1.msra.mxu0 0.0
        %834 = vmatprep.subr.mxu0 0.0
        %835 = vmatpush1.msra.mxu0 0.0
        %836 = vmatprep.subr.mxu0 0.0
        %837 = vmatpush1.msra.mxu0 0.0
        %838 = vmatprep.subr.mxu0 0.0
        %839 = vmatpush1.msra.mxu0 0.0
        %840 = vmatprep.subr.mxu0 0.0
        %841 = vmatpush1.msra.mxu0 0.0
        %842 = vmatprep.mubr.f32.mxu0 0.0
        %843 = vmatmul.mubr.f32.gmra.mrb[0].mxu0 %v776
        %v844 = vpop.f32.mrb[0].mxu0
        %v845 = vadd.f32 %v774, %v844
        %v846 = vpop.f32.mrb[0].mxu0
        %847 = vdwg.mxu0
        %v848 = vadd.f32 %v250, %v845
        %v849 = vsel %vm296, %v848, 0.0
        %850 = vadd.xlane.f32.xlu0 %v849
        %v851 = vpop.xlane.xlu0 %850
        %v852 = vrcp.pop 32.0
        %v853 = vmul.f32 %v851, %v852
        %v854 = vsub.f32 %v848, %v853
        %v855 = vmul.f32 %v854, %v854
        %v856 = vsel %vm296, %v855, 0.0
        %857 = vadd.xlane.f32.xlu0 %v856
        %v858 = vpop.xlane.xlu0 %857
        %v859 = vmul.f32 %v858, %v852
        %v860 = vadd.f32 %v859, 1e-05
        %v861 = vrsqrt.pop %v860
        %v862 = vmul.f32 %v854, %v861
        %v863 = vlaneseq
        %v864 = vshrl.u32 %v863, 7
        %v865 = vsub.s32 4, %v864
        %v866 = vrot.slane %v285, %v865
        %v867 = vmul.f32 %v862, %v866
        %v868 = vlaneseq
        %v869 = vshrl.u32 %v868, 7
        %v870 = vsub.s32 5, %v869
        %v871 = vrot.slane %v285, %v870
        %v872 = vadd.f32 %v867, %v871
        %v873 = vlaneseq
        %v874 = vshrl.u32 %v873, 7
        %v875 = vsub.s32 0, %v874
        %v876 = vrot.slane %v291, %v875
        %v878 = vsel %vm296, %v872, 0
        %880 = vmatprep.subr.mxu0 0.0
        %881 = vmatpush1.msra.mxu0 %v287
        %882 = vmatprep.subr.mxu0 0.0
        %883 = vmatpush1.msra.mxu0 %v288
        %884 = vmatprep.subr.mxu0 0.0
        %885 = vmatpush1.msra.mxu0 %v289
        %886 = vmatprep.subr.mxu0 0.0
        %887 = vmatpush1.msra.mxu0 %v290
        %888 = vmatprep.subr.mxu0 0.0
        %889 = vmatpush1.msra.mxu0 0.0
        %890 = vmatprep.subr.mxu0 0.0
        %891 = vmatpush1.msra.mxu0 0.0
        %892 = vmatprep.subr.mxu0 0.0
        %893 = vmatpush1.msra.mxu0 0.0
        %894 = vmatprep.subr.mxu0 0.0
        %895 = vmatpush1.msra.mxu0 0.0
        %896 = vmatprep.subr.mxu0 0.0
        %897 = vmatpush1.msra.mxu0 0.0
        %898 = vmatprep.subr.mxu0 0.0
        %899 = vmatpush1.msra.mxu0 0.0
        %900 = vmatprep.subr.mxu0 0.0
        %901 = vmatpush1.msra.mxu0 0.0
        %902 = vmatprep.subr.mxu0 0.0
        %903 = vmatpush1.msra.mxu0 0.0
        %904 = vmatprep.subr.mxu0 0.0
        %905 = vmatpush1.msra.mxu0 0.0
        %906 = vmatprep.subr.mxu0 0.0
        %907 = vmatpush1.msra.mxu0 0.0
        %908 = vmatprep.subr.mxu0 0.0
        %909 = vmatpush1.msra.mxu0 0.0
        %910 = vmatprep.subr.mxu0 0.0
        %911 = vmatpush1.msra.mxu0 0.0
        %912 = vmatprep.subr.mxu0 0.0
        %913 = vmatpush1.msra.mxu0 0.0
        %914 = vmatprep.subr.mxu0 0.0
        %915 = vmatpush1.msra.mxu0 0.0
        %916 = vmatprep.subr.mxu0 0.0
        %917 = vmatpush1.msra.mxu0 0.0
        %918 = vmatprep.subr.mxu0 0.0
        %919 = vmatpush1.msra.mxu0 0.0
        %920 = vmatprep.subr.mxu0 0.0
        %921 = vmatpush1.msra.mxu0 0.0
        %922 = vmatprep.subr.mxu0 0.0
        %923 = vmatpush1.msra.mxu0 0.0
        %924 = vmatprep.subr.mxu0 0.0
        %925 = vmatpush1.msra.mxu0 0.0
        %926 = vmatprep.subr.mxu0 0.0
        %927 = vmatpush1.msra.mxu0 0.0
        %928 = vmatprep.subr.mxu0 0.0
        %929 = vmatpush1.msra.mxu0 0.0
        %930 = vmatprep.subr.mxu0 0.0
        %931 = vmatpush1.msra.mxu0 0.0
        %932 = vmatprep.subr.mxu0 0.0
        %933 = vmatpush1.msra.mxu0 0.0
        %934 = vmatprep.subr.mxu0 0.0
        %935 = vmatpush1.msra.mxu0 0.0
        %936 = vmatprep.subr.mxu0 0.0
        %937 = vmatpush1.msra.mxu0 0.0
        %938 = vmatprep.subr.mxu0 0.0
        %939 = vmatpush1.msra.mxu0 0.0
        %940 = vmatprep.subr.mxu0 0.0
        %941 = vmatpush1.msra.mxu0 0.0
        %942 = vmatprep.subr.mxu0 0.0
        %943 = vmatpush1.msra.mxu0 0.0
        %944 = vmatprep.mubr.f32.mxu0 0.0
        %945 = vmatmul.mubr.f32.gmra.mrb[0].mxu0 %v878
        %v946 = vpop.f32.mrb[0].mxu0
        %v947 = vadd.f32 %v876, %v946
        %v948 = vpop.f32.mrb[0].mxu0
        %949 = vdwg.mxu0
        %v950 = vmax.f32 %v947, 0.0
        %v951 = vlaneseq
        %v952 = vshrl.u32 %v951, 7
        %v953 = vsub.s32 6, %v952
        %v954 = vrot.slane %v285, %v953
        %955 = vmatprep.subr.mxu0 0.0
        %956 = vmatpush1.msra.mxu0 %v269
        %957 = vmatprep.subr.mxu0 0.0
        %958 = vmatpush1.msra.mxu0 %v270
        %959 = vmatprep.subr.mxu0 0.0
        %960 = vmatpush1.msra.mxu0 %v271
        %961 = vmatprep.subr.mxu0 0.0
        %962 = vmatpush1.msra.mxu0 %v272
        %963 = vmatprep.subr.mxu0 0.0
        %964 = vmatpush1.msra.mxu0 %v273
        %965 = vmatprep.subr.mxu0 0.0
        %966 = vmatpush1.msra.mxu0 %v274
        %967 = vmatprep.subr.mxu0 0.0
        %968 = vmatpush1.msra.mxu0 %v275
        %969 = vmatprep.subr.mxu0 0.0
        %970 = vmatpush1.msra.mxu0 %v276
        %971 = vmatprep.subr.mxu0 0.0
        %972 = vmatpush1.msra.mxu0 %v277
        %973 = vmatprep.subr.mxu0 0.0
        %974 = vmatpush1.msra.mxu0 %v278
        %975 = vmatprep.subr.mxu0 0.0
        %976 = vmatpush1.msra.mxu0 %v279
        %977 = vmatprep.subr.mxu0 0.0
        %978 = vmatpush1.msra.mxu0 %v280
        %979 = vmatprep.subr.mxu0 0.0
        %980 = vmatpush1.msra.mxu0 %v281
        %981 = vmatprep.subr.mxu0 0.0
        %982 = vmatpush1.msra.mxu0 %v282
        %983 = vmatprep.subr.mxu0 0.0
        %984 = vmatpush1.msra.mxu0 %v283
        %985 = vmatprep.subr.mxu0 0.0
        %986 = vmatpush1.msra.mxu0 %v284
        %987 = vmatprep.subr.mxu0 0.0
        %988 = vmatpush1.msra.mxu0 0.0
        %989 = vmatprep.subr.mxu0 0.0
        %990 = vmatpush1.msra.mxu0 0.0
        %991 = vmatprep.subr.mxu0 0.0
        %992 = vmatpush1.msra.mxu0 0.0
        %993 = vmatprep.subr.mxu0 0.0
        %994 = vmatpush1.msra.mxu0 0.0
        %995 = vmatprep.subr.mxu0 0.0
        %996 = vmatpush1.msra.mxu0 0.0
        %997 = vmatprep.subr.mxu0 0.0
        %998 = vmatpush1.msra.mxu0 0.0
        %999 = vmatprep.subr.mxu0 0.0
        %1000 = vmatpush1.msra.mxu0 0.0
        %1001 = vmatprep.subr.mxu0 0.0
        %1002 = vmatpush1.msra.mxu0 0.0
        %1003 = vmatprep.subr.mxu0 0.0
        %1004 = vmatpush1.msra.mxu0 0.0
        %1005 = vmatprep.subr.mxu0 0.0
        %1006 = vmatpush1.msra.mxu0 0.0
        %1007 = vmatprep.subr.mxu0 0.0
        %1008 = vmatpush1.msra.mxu0 0.0
        %1009 = vmatprep.subr.mxu0 0.0
        %1010 = vmatpush1.msra.mxu0 0.0
        %1011 = vmatprep.subr.mxu0 0.0
        %1012 = vmatpush1.msra.mxu0 0.0
        %1013 = vmatprep.subr.mxu0 0.0
        %1014 = vmatpush1.msra.mxu0 0.0
        %1015 = vmatprep.subr.mxu0 0.0
        %1016 = vmatpush1.msra.mxu0 0.0
        %1017 = vmatprep.subr.mxu0 0.0
        %1018 = vmatpush1.msra.mxu0 0.0
        %1019 = vmatprep.mubr.f32.mxu0 0.0
        %1020 = vmatmul.mubr.f32.gmra.mrb[0].mxu0 %v950
        %v1021 = vpop.f32.mrb[0].mxu0
        %v1022 = vadd.f32 %v954, %v1021
        %v1023 = vpop.f32.mrb[0].mxu0
        %1024 = vdwg.mxu0
        %v1025 = vadd.f32 %v872, %v1022
        %v1026 = vsel %vm296, %v1025, 0.0
        %1027 = vadd.xlane.f32.xlu0 %v1026
        %v1028 = vpop.xlane.xlu0 %1027
        %v1029 = vmul.f32 %v1028, %v852
        %v1030 = vsub.f32 %v1025, %v1029
        %v1031 = vmul.f32 %v1030, %v1030
        %v1032 = vsel %vm296, %v1031, 0.0
        %1033 = vadd.xlane.f32.xlu0 %v1032
        %v1034 = vpop.xlane.xlu0 %1033
        %v1035 = vmul.f32 %v1034, %v852
        %v1036 = vadd.f32 %v1035, 1e-05
        %v1037 = vrsqrt.pop %v1036
        %v1038 = vmul.f32 %v1030, %v1037
        %v1039 = vlaneseq
        %v1040 = vshrl.u32 %v1039, 7
        %v1041 = vsub.s32 7, %v1040
        %v1042 = vrot.slane %v285, %v1041
        %v1043 = vmul.f32 %v1038, %v1042
        %v1044 = vlaneseq
        %v1045 = vshrl.u32 %v1044, 7
        %v1046 = vsub.s32 0, %v1045
        %v1047 = vrot.slane %v286, %v1046
        %v1048 = vadd.f32 %v1043, %v1047
        %v1049 = vld [vmem:[%s1 + $0x150] sm:$0xff]
        %v1050 = vld [vmem:[%s1 + $0x158] sm:$0xff]
        %v1051 = vld [vmem:[%s1 + $0x160] sm:$0xff]
        %v1052 = vld [vmem:[%s1 + $0x168] sm:$0xff]
        %v1053 = vld [vmem:[%s1 + $0x170] sm:$0xff]
        %v1054 = vld [vmem:[%s1 + $0x178] sm:$0xff]
        %v1055 = vld [vmem:[%s1 + $0x180] sm:$0xff]
        %v1056 = vld [vmem:[%s1 + $0x188] sm:$0xff]
        %v1057 = vld [vmem:[%s1 + $0x190] sm:$0xff]
        %v1058 = vld [vmem:[%s1 + $0x198] sm:$0xff]
        %v1059 = vld [vmem:[%s1 + $0x1a0] sm:$0xff]
        %v1060 = vld [vmem:[%s1 + $0x1a8] sm:$0xff]
        %v1061 = vld [vmem:[%s1 + $0x1b0] sm:$0xff]
        %v1062 = vld [vmem:[%s1 + $0x1b8] sm:$0xff]
        %v1063 = vld [vmem:[%s1 + $0x1c0] sm:$0xff]
        %v1064 = vld [vmem:[%s1 + $0x1c8] sm:$0xff]
        %v1065 = vld [vmem:[%s1 + $0x1d0] sm:$0xff]
        %v1066 = vld [vmem:[%s1 + $0x1d8] sm:$0xff]
        %v1067 = vld [vmem:[%s1 + $0x1e0] sm:$0xff]
        %v1068 = vld [vmem:[%s1 + $0x1e8] sm:$0xff]
        %v1069 = vld [vmem:[%s1 + $0x1f0] sm:$0xff]
        %v1070 = vld [vmem:[%s1 + $0x1f8] sm:$0xff]
        %v1071 = vld [vmem:[%s1 + $0x200] sm:$0xff]
        %v1072 = vld [vmem:[%s1 + $0x208] sm:$0xff]
        %v1073 = vld [vmem:[%s1 + $0x210] sm:$0xff]
        %v1074 = vld [vmem:[%s1 + $0x218] sm:$0xff]
        %v1075 = vld [vmem:[%s1 + $0x220] sm:$0xff]
        %v1076 = vld [vmem:[%s1 + $0x228] sm:$0xff]
        %v1077 = vld [vmem:[%s1 + $0x230] sm:$0xff]
        %v1078 = vld [vmem:[%s1 + $0x238] sm:$0xff]
        %v1079 = vld [vmem:[%s1 + $0x240] sm:$0xff]
        %v1080 = vld [vmem:[%s1 + $0x248] sm:$0xff]
        %v1081 = vld [vmem:[%s1 + $0x250] sm:$0xff]
        %v1082 = vld [vmem:[%s1 + $0x258] sm:$0xff]
        %v1083 = vld [vmem:[%s2 + $0x50] sm:$0xff]
        %v1084 = vld [vmem:[%s2 + $0x58] sm:$0xff]
        %v1085 = vld [vmem:[%s2 + $0x60] sm:$0xff]
        %v1086 = vld [vmem:[%s2 + $0x68] sm:$0xff]
        %v1087 = vld [vmem:[%s2 + $0x70] sm:$0x1]
        %v1088 = vlaneseq
        %v1089 = vshrl.u32 %v1088, 7
        %v1090 = vsub.s32 0, %v1089
        %v1091 = vrot.slane %v1081, %v1090
        %v1093 = vsel %vm296, %v1048, 0
        %1095 = vmatprep.subr.mxu0 0.0
        %1096 = vmatpush1.msra.mxu0 %v1049
        %1097 = vmatprep.subr.mxu0 0.0
        %1098 = vmatpush1.msra.mxu0 %v1050
        %1099 = vmatprep.subr.mxu0 0.0
        %1100 = vmatpush1.msra.mxu0 %v1051
        %1101 = vmatprep.subr.mxu0 0.0
        %1102 = vmatpush1.msra.mxu0 %v1052
        %1103 = vmatprep.subr.mxu0 0.0
        %1104 = vmatpush1.msra.mxu0 0.0
        %1105 = vmatprep.subr.mxu0 0.0
        %1106 = vmatpush1.msra.mxu0 0.0
        %1107 = vmatprep.subr.mxu0 0.0
        %1108 = vmatpush1.msra.mxu0 0.0
        %1109 = vmatprep.subr.mxu0 0.0
        %1110 = vmatpush1.msra.mxu0 0.0
        %1111 = vmatprep.subr.mxu0 0.0
        %1112 = vmatpush1.msra.mxu0 0.0
        %1113 = vmatprep.subr.mxu0 0.0
        %1114 = vmatpush1.msra.mxu0 0.0
        %1115 = vmatprep.subr.mxu0 0.0
        %1116 = vmatpush1.msra.mxu0 0.0
        %1117 = vmatprep.subr.mxu0 0.0
        %1118 = vmatpush1.msra.mxu0 0.0
        %1119 = vmatprep.subr.mxu0 0.0
        %1120 = vmatpush1.msra.mxu0 0.0
        %1121 = vmatprep.subr.mxu0 0.0
        %1122 = vmatpush1.msra.mxu0 0.0
        %1123 = vmatprep.subr.mxu0 0.0
        %1124 = vmatpush1.msra.mxu0 0.0
        %1125 = vmatprep.subr.mxu0 0.0
        %1126 = vmatpush1.msra.mxu0 0.0
        %1127 = vmatprep.subr.mxu0 0.0
        %1128 = vmatpush1.msra.mxu0 0.0
        %1129 = vmatprep.subr.mxu0 0.0
        %1130 = vmatpush1.msra.mxu0 0.0
        %1131 = vmatprep.subr.mxu0 0.0
        %1132 = vmatpush1.msra.mxu0 0.0
        %1133 = vmatprep.subr.mxu0 0.0
        %1134 = vmatpush1.msra.mxu0 0.0
        %1135 = vmatprep.subr.mxu0 0.0
        %1136 = vmatpush1.msra.mxu0 0.0
        %1137 = vmatprep.subr.mxu0 0.0
        %1138 = vmatpush1.msra.mxu0 0.0
        %1139 = vmatprep.subr.mxu0 0.0
        %1140 = vmatpush1.msra.mxu0 0.0
        %1141 = vmatprep.subr.mxu0 0.0
        %1142 = vmatpush1.msra.mxu0 0.0
        %1143 = vmatprep.subr.mxu0 0.0
        %1144 = vmatpush1.msra.mxu0 0.0
        %1145 = vmatprep.subr.mxu0 0.0
        %1146 = vmatpush1.msra.mxu0 0.0
        %1147 = vmatprep.subr.mxu0 0.0
        %1148 = vmatpush1.msra.mxu0 0.0
        %1149 = vmatprep.subr.mxu0 0.0
        %1150 = vmatpush1.msra.mxu0 0.0
        %1151 = vmatprep.subr.mxu0 0.0
        %1152 = vmatpush1.msra.mxu0 0.0
        %1153 = vmatprep.subr.mxu0 0.0
        %1154 = vmatpush1.msra.mxu0 0.0
        %1155 = vmatprep.subr.mxu0 0.0
        %1156 = vmatpush1.msra.mxu0 0.0
        %1157 = vmatprep.subr.mxu0 0.0
        %1158 = vmatpush1.msra.mxu0 0.0
        %1159 = vmatprep.mubr.f32.mxu0 0.0
        %1160 = vmatmul.mubr.f32.gmra.mrb[0].mxu0 %v1093
        %v1161 = vpop.f32.mrb[0].mxu0
        %v1162 = vadd.f32 %v1091, %v1161
        %v1163 = vpop.f32.mrb[0].mxu0
        %1164 = vdwg.mxu0
        %v1165 = vlaneseq
        %v1166 = vshrl.u32 %v1165, 7
        %v1167 = vsub.s32 1, %v1166
        %v1168 = vrot.slane %v1081, %v1167
        %1169 = vmatprep.subr.mxu0 0.0
        %1170 = vmatpush1.msra.mxu0 %v1053
        %1171 = vmatprep.subr.mxu0 0.0
        %1172 = vmatpush1.msra.mxu0 %v1054
        %1173 = vmatprep.subr.mxu0 0.0
        %1174 = vmatpush1.msra.mxu0 %v1055
        %1175 = vmatprep.subr.mxu0 0.0
        %1176 = vmatpush1.msra.mxu0 %v1056
        %1177 = vmatprep.subr.mxu0 0.0
        %1178 = vmatpush1.msra.mxu0 0.0
        %1179 = vmatprep.subr.mxu0 0.0
        %1180 = vmatpush1.msra.mxu0 0.0
        %1181 = vmatprep.subr.mxu0 0.0
        %1182 = vmatpush1.msra.mxu0 0.0
        %1183 = vmatprep.subr.mxu0 0.0
        %1184 = vmatpush1.msra.mxu0 0.0
        %1185 = vmatprep.subr.mxu0 0.0
        %1186 = vmatpush1.msra.mxu0 0.0
        %1187 = vmatprep.subr.mxu0 0.0
        %1188 = vmatpush1.msra.mxu0 0.0
        %1189 = vmatprep.subr.mxu0 0.0
        %1190 = vmatpush1.msra.mxu0 0.0
        %1191 = vmatprep.subr.mxu0 0.0
        %1192 = vmatpush1.msra.mxu0 0.0
        %1193 = vmatprep.subr.mxu0 0.0
        %1194 = vmatpush1.msra.mxu0 0.0
        %1195 = vmatprep.subr.mxu0 0.0
        %1196 = vmatpush1.msra.mxu0 0.0
        %1197 = vmatprep.subr.mxu0 0.0
        %1198 = vmatpush1.msra.mxu0 0.0
        %1199 = vmatprep.subr.mxu0 0.0
        %1200 = vmatpush1.msra.mxu0 0.0
        %1201 = vmatprep.subr.mxu0 0.0
        %1202 = vmatpush1.msra.mxu0 0.0
        %1203 = vmatprep.subr.mxu0 0.0
        %1204 = vmatpush1.msra.mxu0 0.0
        %1205 = vmatprep.subr.mxu0 0.0
        %1206 = vmatpush1.msra.mxu0 0.0
        %1207 = vmatprep.subr.mxu0 0.0
        %1208 = vmatpush1.msra.mxu0 0.0
        %1209 = vmatprep.subr.mxu0 0.0
        %1210 = vmatpush1.msra.mxu0 0.0
        %1211 = vmatprep.subr.mxu0 0.0
        %1212 = vmatpush1.msra.mxu0 0.0
        %1213 = vmatprep.subr.mxu0 0.0
        %1214 = vmatpush1.msra.mxu0 0.0
        %1215 = vmatprep.subr.mxu0 0.0
        %1216 = vmatpush1.msra.mxu0 0.0
        %1217 = vmatprep.subr.mxu0 0.0
        %1218 = vmatpush1.msra.mxu0 0.0
        %1219 = vmatprep.subr.mxu0 0.0
        %1220 = vmatpush1.msra.mxu0 0.0
        %1221 = vmatprep.subr.mxu0 0.0
        %1222 = vmatpush1.msra.mxu0 0.0
        %1223 = vmatprep.subr.mxu0 0.0
        %1224 = vmatpush1.msra.mxu0 0.0
        %1225 = vmatprep.subr.mxu0 0.0
        %1226 = vmatpush1.msra.mxu0 0.0
        %1227 = vmatprep.subr.mxu0 0.0
        %1228 = vmatpush1.msra.mxu0 0.0
        %1229 = vmatprep.subr.mxu0 0.0
        %1230 = vmatpush1.msra.mxu0 0.0
        %1231 = vmatprep.subr.mxu0 0.0
        %1232 = vmatpush1.msra.mxu0 0.0
        %1233 = vmatprep.mubr.f32.mxu0 0.0
        %1234 = vmatmul.mubr.f32.gmra.mrb[0].mxu0 %v1093
        %v1235 = vpop.f32.mrb[0].mxu0
        %v1236 = vadd.f32 %v1168, %v1235
        %v1237 = vpop.f32.mrb[0].mxu0
        %1238 = vdwg.mxu0
        %v1239 = vlaneseq
        %v1240 = vshrl.u32 %v1239, 7
        %v1241 = vsub.s32 2, %v1240
        %v1242 = vrot.slane %v1081, %v1241
        %1243 = vmatprep.subr.mxu0 0.0
        %1244 = vmatpush1.msra.mxu0 %v1057
        %1245 = vmatprep.subr.mxu0 0.0
        %1246 = vmatpush1.msra.mxu0 %v1058
        %1247 = vmatprep.subr.mxu0 0.0
        %1248 = vmatpush1.msra.mxu0 %v1059
        %1249 = vmatprep.subr.mxu0 0.0
        %1250 = vmatpush1.msra.mxu0 %v1060
        %1251 = vmatprep.subr.mxu0 0.0
        %1252 = vmatpush1.msra.mxu0 0.0
        %1253 = vmatprep.subr.mxu0 0.0
        %1254 = vmatpush1.msra.mxu0 0.0
        %1255 = vmatprep.subr.mxu0 0.0
        %1256 = vmatpush1.msra.mxu0 0.0
        %1257 = vmatprep.subr.mxu0 0.0
        %1258 = vmatpush1.msra.mxu0 0.0
        %1259 = vmatprep.subr.mxu0 0.0
        %1260 = vmatpush1.msra.mxu0 0.0
        %1261 = vmatprep.subr.mxu0 0.0
        %1262 = vmatpush1.msra.mxu0 0.0
        %1263 = vmatprep.subr.mxu0 0.0
        %1264 = vmatpush1.msra.mxu0 0.0
        %1265 = vmatprep.subr.mxu0 0.0
        %1266 = vmatpush1.msra.mxu0 0.0
        %1267 = vmatprep.subr.mxu0 0.0
        %1268 = vmatpush1.msra.mxu0 0.0
        %1269 = vmatprep.subr.mxu0 0.0
        %1270 = vmatpush1.msra.mxu0 0.0
        %1271 = vmatprep.subr.mxu0 0.0
        %1272 = vmatpush1.msra.mxu0 0.0
        %1273 = vmatprep.subr.mxu0 0.0
        %1274 = vmatpush1.msra.mxu0 0.0
        %1275 = vmatprep.subr.mxu0 0.0
        %1276 = vmatpush1.msra.mxu0 0.0
        %1277 = vmatprep.subr.mxu0 0.0
        %1278 = vmatpush1.msra.mxu0 0.0
        %1279 = vmatprep.subr.mxu0 0.0
        %1280 = vmatpush1.msra.mxu0 0.0
        %1281 = vmatprep.subr.mxu0 0.0
        %1282 = vmatpush1.msra.mxu0 0.0
        %1283 = vmatprep.subr.mxu0 0.0
        %1284 = vmatpush1.msra.mxu0 0.0
        %1285 = vmatprep.subr.mxu0 0.0
        %1286 = vmatpush1.msra.mxu0 0.0
        %1287 = vmatprep.subr.mxu0 0.0
        %1288 = vmatpush1.msra.mxu0 0.0
        %1289 = vmatprep.subr.mxu0 0.0
        %1290 = vmatpush1.msra.mxu0 0.0
        %1291 = vmatprep.subr.mxu0 0.0
        %1292 = vmatpush1.msra.mxu0 0.0
        %1293 = vmatprep.subr.mxu0 0.0
        %1294 = vmatpush1.msra.mxu0 0.0
        %1295 = vmatprep.subr.mxu0 0.0
        %1296 = vmatpush1.msra.mxu0 0.0
        %1297 = vmatprep.subr.mxu0 0.0
        %1298 = vmatpush1.msra.mxu0 0.0
        %1299 = vmatprep.subr.mxu0 0.0
        %1300 = vmatpush1.msra.mxu0 0.0
        %1301 = vmatprep.subr.mxu0 0.0
        %1302 = vmatpush1.msra.mxu0 0.0
        %1303 = vmatprep.subr.mxu0 0.0
        %1304 = vmatpush1.msra.mxu0 0.0
        %1305 = vmatprep.subr.mxu0 0.0
        %1306 = vmatpush1.msra.mxu0 0.0
        %1307 = vmatprep.mubr.f32.mxu0 0.0
        %1308 = vmatmul.mubr.f32.gmra.mrb[0].mxu0 %v1093
        %v1309 = vpop.f32.mrb[0].mxu0
        %v1310 = vadd.f32 %v1242, %v1309
        %v1311 = vpop.f32.mrb[0].mxu0
        %1312 = vdwg.mxu0
        %v1313 = vmul.f32 %v1162, %v171
        %v1314 = vmul.f32 %v1162, %v172
        %v1315 = vmul.f32 %v1162, %v173
        %v1316 = vmul.f32 %v1162, %v174
        %v1318 = vsel %vm296, %v1313, 0
        %v1321 = vsel %vm296, %v1314, 0
        %v1324 = vsel %vm296, %v1315, 0
        %v1327 = vsel %vm296, %v1316, 0
        %v1330 = vsel %vm296, %v1236, 0
        %1332 = vmatprep.subr.mxu0 0.0
        %1333 = vmatpush1.xpose.msra.mxu0 %v1330
        %1334 = vmatprep.subr.mxu0 0.0
        %1335 = vmatpush1.xpose.msra.mxu0 0.0
        %1336 = vmatprep.subr.mxu0 0.0
        %1337 = vmatpush1.xpose.msra.mxu0 0.0
        %1338 = vmatprep.subr.mxu0 0.0
        %1339 = vmatpush1.xpose.msra.mxu0 0.0
        %1340 = vmatprep.subr.mxu0 0.0
        %1341 = vmatpush1.xpose.msra.mxu0 0.0
        %1342 = vmatprep.subr.mxu0 0.0
        %1343 = vmatpush1.xpose.msra.mxu0 0.0
        %1344 = vmatprep.subr.mxu0 0.0
        %1345 = vmatpush1.xpose.msra.mxu0 0.0
        %1346 = vmatprep.subr.mxu0 0.0
        %1347 = vmatpush1.xpose.msra.mxu0 0.0
        %1348 = vmatprep.subr.mxu0 0.0
        %1349 = vmatpush1.xpose.msra.mxu0 0.0
        %1350 = vmatprep.subr.mxu0 0.0
        %1351 = vmatpush1.xpose.msra.mxu0 0.0
        %1352 = vmatprep.subr.mxu0 0.0
        %1353 = vmatpush1.xpose.msra.mxu0 0.0
        %1354 = vmatprep.subr.mxu0 0.0
        %1355 = vmatpush1.xpose.msra.mxu0 0.0
        %1356 = vmatprep.subr.mxu0 0.0
        %1357 = vmatpush1.xpose.msra.mxu0 0.0
        %1358 = vmatprep.subr.mxu0 0.0
        %1359 = vmatpush1.xpose.msra.mxu0 0.0
        %1360 = vmatprep.subr.mxu0 0.0
        %1361 = vmatpush1.xpose.msra.mxu0 0.0
        %1362 = vmatprep.subr.mxu0 0.0
        %1363 = vmatpush1.xpose.msra.mxu0 0.0
        %1364 = vmatprep.subr.mxu0 0.0
        %1365 = vmatpush1.xpose.msra.mxu0 0.0
        %1366 = vmatprep.subr.mxu0 0.0
        %1367 = vmatpush1.xpose.msra.mxu0 0.0
        %1368 = vmatprep.subr.mxu0 0.0
        %1369 = vmatpush1.xpose.msra.mxu0 0.0
        %1370 = vmatprep.subr.mxu0 0.0
        %1371 = vmatpush1.xpose.msra.mxu0 0.0
        %1372 = vmatprep.subr.mxu0 0.0
        %1373 = vmatpush1.xpose.msra.mxu0 0.0
        %1374 = vmatprep.subr.mxu0 0.0
        %1375 = vmatpush1.xpose.msra.mxu0 0.0
        %1376 = vmatprep.subr.mxu0 0.0
        %1377 = vmatpush1.xpose.msra.mxu0 0.0
        %1378 = vmatprep.subr.mxu0 0.0
        %1379 = vmatpush1.xpose.msra.mxu0 0.0
        %1380 = vmatprep.subr.mxu0 0.0
        %1381 = vmatpush1.xpose.msra.mxu0 0.0
        %1382 = vmatprep.subr.mxu0 0.0
        %1383 = vmatpush1.xpose.msra.mxu0 0.0
        %1384 = vmatprep.subr.mxu0 0.0
        %1385 = vmatpush1.xpose.msra.mxu0 0.0
        %1386 = vmatprep.subr.mxu0 0.0
        %1387 = vmatpush1.xpose.msra.mxu0 0.0
        %1388 = vmatprep.subr.mxu0 0.0
        %1389 = vmatpush1.xpose.msra.mxu0 0.0
        %1390 = vmatprep.subr.mxu0 0.0
        %1391 = vmatpush1.xpose.msra.mxu0 0.0
        %1392 = vmatprep.subr.mxu0 0.0
        %1393 = vmatpush1.xpose.msra.mxu0 0.0
        %1394 = vmatprep.subr.mxu0 0.0
        %1395 = vmatpush1.xpose.msra.mxu0 0.0
        %1396 = vmatprep.mubr.f32.mxu0 0.0
        %1397 = vmatmul.mubr.f32.gmra.mrb[0].mxu0 %v1318
        %v1398 = vpop.f32.mrb[0].mxu0
        %v1399 = vadd.f32 0.0, %v1398
        %v1400 = vpop.f32.mrb[0].mxu0
        %1401 = vmatprep.mubr.f32.mxu0 0.0
        %1402 = vmatmul.mubr.f32.gmra.mrb[0].mxu0 %v1321
        %v1403 = vpop.f32.mrb[0].mxu0
        %v1404 = vadd.f32 0.0, %v1403
        %v1405 = vpop.f32.mrb[0].mxu0
        %1406 = vmatprep.mubr.f32.mxu0 0.0
        %1407 = vmatmul.mubr.f32.gmra.mrb[0].mxu0 %v1324
        %v1408 = vpop.f32.mrb[0].mxu0
        %v1409 = vadd.f32 0.0, %v1408
        %v1410 = vpop.f32.mrb[0].mxu0
        %1411 = vmatprep.mubr.f32.mxu0 0.0
        %1412 = vmatmul.mubr.f32.gmra.mrb[0].mxu0 %v1327
        %v1413 = vpop.f32.mrb[0].mxu0
        %v1414 = vadd.f32 0.0, %v1413
        %v1415 = vpop.f32.mrb[0].mxu0
        %1416 = vdwg.mxu0
        %v1417 = vsel %vm622, %v1399, -inf
        %1418 = vmax.xlane.f32.xlu0 %v1417
        %v1419 = vpop.xlane.xlu0 %1418
        %v1420 = vsel %vm622, %v1404, -inf
        %1421 = vmax.xlane.f32.xlu0 %v1420
        %v1422 = vpop.xlane.xlu0 %1421
        %v1423 = vsel %vm622, %v1409, -inf
        %1424 = vmax.xlane.f32.xlu0 %v1423
        %v1425 = vpop.xlane.xlu0 %1424
        %v1426 = vsel %vm622, %v1414, -inf
        %1427 = vmax.xlane.f32.xlu0 %v1426
        %v1428 = vpop.xlane.xlu0 %1427
        %v1429 = vsub.f32 %v1399, %v1419
        %v1430 = vsub.f32 %v1404, %v1422
        %v1431 = vsub.f32 %v1409, %v1425
        %v1432 = vsub.f32 %v1414, %v1428
        %v1433 = vmul.f32 %v1429, 1.442695
        %v1434 = vpow.pop %v1433
        %v1435 = vmul.f32 %v1430, 1.442695
        %v1436 = vpow.pop %v1435
        %v1437 = vmul.f32 %v1431, 1.442695
        %v1438 = vpow.pop %v1437
        %v1439 = vmul.f32 %v1432, 1.442695
        %v1440 = vpow.pop %v1439
        %v1441 = vsel %vm622, %v1434, 0.0
        %1442 = vadd.xlane.f32.xlu0 %v1441
        %v1443 = vpop.xlane.xlu0 %1442
        %v1444 = vsel %vm622, %v1436, 0.0
        %1445 = vadd.xlane.f32.xlu0 %v1444
        %v1446 = vpop.xlane.xlu0 %1445
        %v1447 = vsel %vm622, %v1438, 0.0
        %1448 = vadd.xlane.f32.xlu0 %v1447
        %v1449 = vpop.xlane.xlu0 %1448
        %v1450 = vsel %vm622, %v1440, 0.0
        %1451 = vadd.xlane.f32.xlu0 %v1450
        %v1452 = vpop.xlane.xlu0 %1451
        %v1453 = vrcp.pop %v1443
        %v1454 = vrcp.pop %v1446
        %v1455 = vrcp.pop %v1449
        %v1456 = vrcp.pop %v1452
        %v1457 = vmul.f32 %v1434, %v1453
        %v1458 = vmul.f32 %v1436, %v1454
        %v1459 = vmul.f32 %v1438, %v1455
        %v1460 = vmul.f32 %v1440, %v1456
        %v1462 = vsel %vm622, %v1457, 0
        %v1465 = vsel %vm622, %v1458, 0
        %v1468 = vsel %vm622, %v1459, 0
        %v1471 = vsel %vm622, %v1460, 0
        %1473 = vmatprep.subr.mxu0 0.0
        %1474 = vmatpush1.msra.mxu0 %v1310
        %1475 = vmatprep.subr.mxu0 0.0
        %1476 = vmatpush1.msra.mxu0 0.0
        %1477 = vmatprep.subr.mxu0 0.0
        %1478 = vmatpush1.msra.mxu0 0.0
        %1479 = vmatprep.subr.mxu0 0.0
        %1480 = vmatpush1.msra.mxu0 0.0
        %1481 = vmatprep.subr.mxu0 0.0
        %1482 = vmatpush1.msra.mxu0 0.0
        %1483 = vmatprep.subr.mxu0 0.0
        %1484 = vmatpush1.msra.mxu0 0.0
        %1485 = vmatprep.subr.mxu0 0.0
        %1486 = vmatpush1.msra.mxu0 0.0
        %1487 = vmatprep.subr.mxu0 0.0
        %1488 = vmatpush1.msra.mxu0 0.0
        %1489 = vmatprep.subr.mxu0 0.0
        %1490 = vmatpush1.msra.mxu0 0.0
        %1491 = vmatprep.subr.mxu0 0.0
        %1492 = vmatpush1.msra.mxu0 0.0
        %1493 = vmatprep.subr.mxu0 0.0
        %1494 = vmatpush1.msra.mxu0 0.0
        %1495 = vmatprep.subr.mxu0 0.0
        %1496 = vmatpush1.msra.mxu0 0.0
        %1497 = vmatprep.subr.mxu0 0.0
        %1498 = vmatpush1.msra.mxu0 0.0
        %1499 = vmatprep.subr.mxu0 0.0
        %1500 = vmatpush1.msra.mxu0 0.0
        %1501 = vmatprep.subr.mxu0 0.0
        %1502 = vmatpush1.msra.mxu0 0.0
        %1503 = vmatprep.subr.mxu0 0.0
        %1504 = vmatpush1.msra.mxu0 0.0
        %1505 = vmatprep.subr.mxu0 0.0
        %1506 = vmatpush1.msra.mxu0 0.0
        %1507 = vmatprep.subr.mxu0 0.0
        %1508 = vmatpush1.msra.mxu0 0.0
        %1509 = vmatprep.subr.mxu0 0.0
        %1510 = vmatpush1.msra.mxu0 0.0
        %1511 = vmatprep.subr.mxu0 0.0
        %1512 = vmatpush1.msra.mxu0 0.0
        %1513 = vmatprep.subr.mxu0 0.0
        %1514 = vmatpush1.msra.mxu0 0.0
        %1515 = vmatprep.subr.mxu0 0.0
        %1516 = vmatpush1.msra.mxu0 0.0
        %1517 = vmatprep.subr.mxu0 0.0
        %1518 = vmatpush1.msra.mxu0 0.0
        %1519 = vmatprep.subr.mxu0 0.0
        %1520 = vmatpush1.msra.mxu0 0.0
        %1521 = vmatprep.subr.mxu0 0.0
        %1522 = vmatpush1.msra.mxu0 0.0
        %1523 = vmatprep.subr.mxu0 0.0
        %1524 = vmatpush1.msra.mxu0 0.0
        %1525 = vmatprep.subr.mxu0 0.0
        %1526 = vmatpush1.msra.mxu0 0.0
        %1527 = vmatprep.subr.mxu0 0.0
        %1528 = vmatpush1.msra.mxu0 0.0
        %1529 = vmatprep.subr.mxu0 0.0
        %1530 = vmatpush1.msra.mxu0 0.0
        %1531 = vmatprep.subr.mxu0 0.0
        %1532 = vmatpush1.msra.mxu0 0.0
        %1533 = vmatprep.subr.mxu0 0.0
        %1534 = vmatpush1.msra.mxu0 0.0
        %1535 = vmatprep.subr.mxu0 0.0
        %1536 = vmatpush1.msra.mxu0 0.0
        %1537 = vmatprep.mubr.f32.mxu0 0.0
        %1538 = vmatmul.mubr.f32.gmra.mrb[0].mxu0 %v1462
        %v1539 = vpop.f32.mrb[0].mxu0
        %v1540 = vadd.f32 0.0, %v1539
        %v1541 = vpop.f32.mrb[0].mxu0
        %1542 = vmatprep.mubr.f32.mxu0 0.0
        %1543 = vmatmul.mubr.f32.gmra.mrb[0].mxu0 %v1465
        %v1544 = vpop.f32.mrb[0].mxu0
        %v1545 = vadd.f32 0.0, %v1544
        %v1546 = vpop.f32.mrb[0].mxu0
        %1547 = vmatprep.mubr.f32.mxu0 0.0
        %1548 = vmatmul.mubr.f32.gmra.mrb[0].mxu0 %v1468
        %v1549 = vpop.f32.mrb[0].mxu0
        %v1550 = vadd.f32 0.0, %v1549
        %v1551 = vpop.f32.mrb[0].mxu0
        %1552 = vmatprep.mubr.f32.mxu0 0.0
        %1553 = vmatmul.mubr.f32.gmra.mrb[0].mxu0 %v1471
        %v1554 = vpop.f32.mrb[0].mxu0
        %v1555 = vadd.f32 0.0, %v1554
        %v1556 = vpop.f32.mrb[0].mxu0
        %1557 = vdwg.mxu0
        %v1558 = vmul.f32 %v1540, %v171
        %v1559 = vmul.f32 %v1545, %v172
        %v1560 = vmul.f32 %v1550, %v173
        %v1561 = vmul.f32 %v1555, %v174
        %v1562 = vadd.f32 %v1558, %v1559
        %v1563 = vadd.f32 %v1562, %v1560
        %v1564 = vadd.f32 %v1563, %v1561
        %v1565 = vlaneseq
        %v1566 = vshrl.u32 %v1565, 7
        %v1567 = vsub.s32 3, %v1566
        %v1568 = vrot.slane %v1081, %v1567
        %v1570 = vsel %vm296, %v1564, 0
        %1572 = vmatprep.subr.mxu0 0.0
        %1573 = vmatpush1.msra.mxu0 %v1061
        %1574 = vmatprep.subr.mxu0 0.0
        %1575 = vmatpush1.msra.mxu0 %v1062
        %1576 = vmatprep.subr.mxu0 0.0
        %1577 = vmatpush1.msra.mxu0 %v1063
        %1578 = vmatprep.subr.mxu0 0.0
        %1579 = vmatpush1.msra.mxu0 %v1064
        %1580 = vmatprep.subr.mxu0 0.0
        %1581 = vmatpush1.msra.mxu0 0.0
        %1582 = vmatprep.subr.mxu0 0.0
        %1583 = vmatpush1.msra.mxu0 0.0
        %1584 = vmatprep.subr.mxu0 0.0
        %1585 = vmatpush1.msra.mxu0 0.0
        %1586 = vmatprep.subr.mxu0 0.0
        %1587 = vmatpush1.msra.mxu0 0.0
        %1588 = vmatprep.subr.mxu0 0.0
        %1589 = vmatpush1.msra.mxu0 0.0
        %1590 = vmatprep.subr.mxu0 0.0
        %1591 = vmatpush1.msra.mxu0 0.0
        %1592 = vmatprep.subr.mxu0 0.0
        %1593 = vmatpush1.msra.mxu0 0.0
        %1594 = vmatprep.subr.mxu0 0.0
        %1595 = vmatpush1.msra.mxu0 0.0
        %1596 = vmatprep.subr.mxu0 0.0
        %1597 = vmatpush1.msra.mxu0 0.0
        %1598 = vmatprep.subr.mxu0 0.0
        %1599 = vmatpush1.msra.mxu0 0.0
        %1600 = vmatprep.subr.mxu0 0.0
        %1601 = vmatpush1.msra.mxu0 0.0
        %1602 = vmatprep.subr.mxu0 0.0
        %1603 = vmatpush1.msra.mxu0 0.0
        %1604 = vmatprep.subr.mxu0 0.0
        %1605 = vmatpush1.msra.mxu0 0.0
        %1606 = vmatprep.subr.mxu0 0.0
        %1607 = vmatpush1.msra.mxu0 0.0
        %1608 = vmatprep.subr.mxu0 0.0
        %1609 = vmatpush1.msra.mxu0 0.0
        %1610 = vmatprep.subr.mxu0 0.0
        %1611 = vmatpush1.msra.mxu0 0.0
        %1612 = vmatprep.subr.mxu0 0.0
        %1613 = vmatpush1.msra.mxu0 0.0
        %1614 = vmatprep.subr.mxu0 0.0
        %1615 = vmatpush1.msra.mxu0 0.0
        %1616 = vmatprep.subr.mxu0 0.0
        %1617 = vmatpush1.msra.mxu0 0.0
        %1618 = vmatprep.subr.mxu0 0.0
        %1619 = vmatpush1.msra.mxu0 0.0
        %1620 = vmatprep.subr.mxu0 0.0
        %1621 = vmatpush1.msra.mxu0 0.0
        %1622 = vmatprep.subr.mxu0 0.0
        %1623 = vmatpush1.msra.mxu0 0.0
        %1624 = vmatprep.subr.mxu0 0.0
        %1625 = vmatpush1.msra.mxu0 0.0
        %1626 = vmatprep.subr.mxu0 0.0
        %1627 = vmatpush1.msra.mxu0 0.0
        %1628 = vmatprep.subr.mxu0 0.0
        %1629 = vmatpush1.msra.mxu0 0.0
        %1630 = vmatprep.subr.mxu0 0.0
        %1631 = vmatpush1.msra.mxu0 0.0
        %1632 = vmatprep.subr.mxu0 0.0
        %1633 = vmatpush1.msra.mxu0 0.0
        %1634 = vmatprep.subr.mxu0 0.0
        %1635 = vmatpush1.msra.mxu0 0.0
        %1636 = vmatprep.mubr.f32.mxu0 0.0
        %1637 = vmatmul.mubr.f32.gmra.mrb[0].mxu0 %v1570
        %v1638 = vpop.f32.mrb[0].mxu0
        %v1639 = vadd.f32 %v1568, %v1638
        %v1640 = vpop.f32.mrb[0].mxu0
        %1641 = vdwg.mxu0
        %v1642 = vadd.f32 %v1048, %v1639
        %v1643 = vsel %vm296, %v1642, 0.0
        %1644 = vadd.xlane.f32.xlu0 %v1643
        %v1645 = vpop.xlane.xlu0 %1644
        %v1646 = vmul.f32 %v1645, %v852
        %v1647 = vsub.f32 %v1642, %v1646
        %v1648 = vmul.f32 %v1647, %v1647
        %v1649 = vsel %vm296, %v1648, 0.0
        %1650 = vadd.xlane.f32.xlu0 %v1649
        %v1651 = vpop.xlane.xlu0 %1650
        %v1652 = vmul.f32 %v1651, %v852
        %v1653 = vadd.f32 %v1652, 1e-05
        %v1654 = vrsqrt.pop %v1653
        %v1655 = vmul.f32 %v1647, %v1654
        %v1656 = vlaneseq
        %v1657 = vshrl.u32 %v1656, 7
        %v1658 = vsub.s32 4, %v1657
        %v1659 = vrot.slane %v1081, %v1658
        %v1660 = vmul.f32 %v1655, %v1659
        %v1661 = vlaneseq
        %v1662 = vshrl.u32 %v1661, 7
        %v1663 = vsub.s32 5, %v1662
        %v1664 = vrot.slane %v1081, %v1663
        %v1665 = vadd.f32 %v1660, %v1664
        %v1666 = vlaneseq
        %v1667 = vshrl.u32 %v1666, 7
        %v1668 = vsub.s32 0, %v1667
        %v1669 = vrot.slane %v1087, %v1668
        %v1671 = vsel %vm296, %v1665, 0
        %1673 = vmatprep.subr.mxu0 0.0
        %1674 = vmatpush1.msra.mxu0 %v1083
        %1675 = vmatprep.subr.mxu0 0.0
        %1676 = vmatpush1.msra.mxu0 %v1084
        %1677 = vmatprep.subr.mxu0 0.0
        %1678 = vmatpush1.msra.mxu0 %v1085
        %1679 = vmatprep.subr.mxu0 0.0
        %1680 = vmatpush1.msra.mxu0 %v1086
        %1681 = vmatprep.subr.mxu0 0.0
        %1682 = vmatpush1.msra.mxu0 0.0
        %1683 = vmatprep.subr.mxu0 0.0
        %1684 = vmatpush1.msra.mxu0 0.0
        %1685 = vmatprep.subr.mxu0 0.0
        %1686 = vmatpush1.msra.mxu0 0.0
        %1687 = vmatprep.subr.mxu0 0.0
        %1688 = vmatpush1.msra.mxu0 0.0
        %1689 = vmatprep.subr.mxu0 0.0
        %1690 = vmatpush1.msra.mxu0 0.0
        %1691 = vmatprep.subr.mxu0 0.0
        %1692 = vmatpush1.msra.mxu0 0.0
        %1693 = vmatprep.subr.mxu0 0.0
        %1694 = vmatpush1.msra.mxu0 0.0
        %1695 = vmatprep.subr.mxu0 0.0
        %1696 = vmatpush1.msra.mxu0 0.0
        %1697 = vmatprep.subr.mxu0 0.0
        %1698 = vmatpush1.msra.mxu0 0.0
        %1699 = vmatprep.subr.mxu0 0.0
        %1700 = vmatpush1.msra.mxu0 0.0
        %1701 = vmatprep.subr.mxu0 0.0
        %1702 = vmatpush1.msra.mxu0 0.0
        %1703 = vmatprep.subr.mxu0 0.0
        %1704 = vmatpush1.msra.mxu0 0.0
        %1705 = vmatprep.subr.mxu0 0.0
        %1706 = vmatpush1.msra.mxu0 0.0
        %1707 = vmatprep.subr.mxu0 0.0
        %1708 = vmatpush1.msra.mxu0 0.0
        %1709 = vmatprep.subr.mxu0 0.0
        %1710 = vmatpush1.msra.mxu0 0.0
        %1711 = vmatprep.subr.mxu0 0.0
        %1712 = vmatpush1.msra.mxu0 0.0
        %1713 = vmatprep.subr.mxu0 0.0
        %1714 = vmatpush1.msra.mxu0 0.0
        %1715 = vmatprep.subr.mxu0 0.0
        %1716 = vmatpush1.msra.mxu0 0.0
        %1717 = vmatprep.subr.mxu0 0.0
        %1718 = vmatpush1.msra.mxu0 0.0
        %1719 = vmatprep.subr.mxu0 0.0
        %1720 = vmatpush1.msra.mxu0 0.0
        %1721 = vmatprep.subr.mxu0 0.0
        %1722 = vmatpush1.msra.mxu0 0.0
        %1723 = vmatprep.subr.mxu0 0.0
        %1724 = vmatpush1.msra.mxu0 0.0
        %1725 = vmatprep.subr.mxu0 0.0
        %1726 = vmatpush1.msra.mxu0 0.0
        %1727 = vmatprep.subr.mxu0 0.0
        %1728 = vmatpush1.msra.mxu0 0.0
        %1729 = vmatprep.subr.mxu0 0.0
        %1730 = vmatpush1.msra.mxu0 0.0
        %1731 = vmatprep.subr.mxu0 0.0
        %1732 = vmatpush1.msra.mxu0 0.0
        %1733 = vmatprep.subr.mxu0 0.0
        %1734 = vmatpush1.msra.mxu0 0.0
        %1735 = vmatprep.subr.mxu0 0.0
        %1736 = vmatpush1.msra.mxu0 0.0
        %1737 = vmatprep.mubr.f32.mxu0 0.0
        %1738 = vmatmul.mubr.f32.gmra.mrb[0].mxu0 %v1671
        %v1739 = vpop.f32.mrb[0].mxu0
        %v1740 = vadd.f32 %v1669, %v1739
        %v1741 = vpop.f32.mrb[0].mxu0
        %1742 = vdwg.mxu0
        %v1743 = vmax.f32 %v1740, 0.0
        %v1744 = vlaneseq
        %v1745 = vshrl.u32 %v1744, 7
        %v1746 = vsub.s32 6, %v1745
        %v1747 = vrot.slane %v1081, %v1746
        %1748 = vmatprep.subr.mxu0 0.0
        %1749 = vmatpush1.msra.mxu0 %v1065
        %1750 = vmatprep.subr.mxu0 0.0
        %1751 = vmatpush1.msra.mxu0 %v1066
        %1752 = vmatprep.subr.mxu0 0.0
        %1753 = vmatpush1.msra.mxu0 %v1067
        %1754 = vmatprep.subr.mxu0 0.0
        %1755 = vmatpush1.msra.mxu0 %v1068
        %1756 = vmatprep.subr.mxu0 0.0
        %1757 = vmatpush1.msra.mxu0 %v1069
        %1758 = vmatprep.subr.mxu0 0.0
        %1759 = vmatpush1.msra.mxu0 %v1070
        %1760 = vmatprep.subr.mxu0 0.0
        %1761 = vmatpush1.msra.mxu0 %v1071
        %1762 = vmatprep.subr.mxu0 0.0
        %1763 = vmatpush1.msra.mxu0 %v1072
        %1764 = vmatprep.subr.mxu0 0.0
        %1765 = vmatpush1.msra.mxu0 %v1073
        %1766 = vmatprep.subr.mxu0 0.0
        %1767 = vmatpush1.msra.mxu0 %v1074
        %1768 = vmatprep.subr.mxu0 0.0
        %1769 = vmatpush1.msra.mxu0 %v1075
        %1770 = vmatprep.subr.mxu0 0.0
        %1771 = vmatpush1.msra.mxu0 %v1076
        %1772 = vmatprep.subr.mxu0 0.0
        %1773 = vmatpush1.msra.mxu0 %v1077
        %1774 = vmatprep.subr.mxu0 0.0
        %1775 = vmatpush1.msra.mxu0 %v1078
        %1776 = vmatprep.subr.mxu0 0.0
        %1777 = vmatpush1.msra.mxu0 %v1079
        %1778 = vmatprep.subr.mxu0 0.0
        %1779 = vmatpush1.msra.mxu0 %v1080
        %1780 = vmatprep.subr.mxu0 0.0
        %1781 = vmatpush1.msra.mxu0 0.0
        %1782 = vmatprep.subr.mxu0 0.0
        %1783 = vmatpush1.msra.mxu0 0.0
        %1784 = vmatprep.subr.mxu0 0.0
        %1785 = vmatpush1.msra.mxu0 0.0
        %1786 = vmatprep.subr.mxu0 0.0
        %1787 = vmatpush1.msra.mxu0 0.0
        %1788 = vmatprep.subr.mxu0 0.0
        %1789 = vmatpush1.msra.mxu0 0.0
        %1790 = vmatprep.subr.mxu0 0.0
        %1791 = vmatpush1.msra.mxu0 0.0
        %1792 = vmatprep.subr.mxu0 0.0
        %1793 = vmatpush1.msra.mxu0 0.0
        %1794 = vmatprep.subr.mxu0 0.0
        %1795 = vmatpush1.msra.mxu0 0.0
        %1796 = vmatprep.subr.mxu0 0.0
        %1797 = vmatpush1.msra.mxu0 0.0
        %1798 = vmatprep.subr.mxu0 0.0
        %1799 = vmatpush1.msra.mxu0 0.0
        %1800 = vmatprep.subr.mxu0 0.0
        %1801 = vmatpush1.msra.mxu0 0.0
        %1802 = vmatprep.subr.mxu0 0.0
        %1803 = vmatpush1.msra.mxu0 0.0
        %1804 = vmatprep.subr.mxu0 0.0
        %1805 = vmatpush1.msra.mxu0 0.0
        %1806 = vmatprep.subr.mxu0 0.0
        %1807 = vmatpush1.msra.mxu0 0.0
        %1808 = vmatprep.subr.mxu0 0.0
        %1809 = vmatpush1.msra.mxu0 0.0
        %1810 = vmatprep.subr.mxu0 0.0
        %1811 = vmatpush1.msra.mxu0 0.0
        %1812 = vmatprep.mubr.f32.mxu0 0.0
        %1813 = vmatmul.mubr.f32.gmra.mrb[0].mxu0 %v1743
        %v1814 = vpop.f32.mrb[0].mxu0
        %v1815 = vadd.f32 %v1747, %v1814
        %v1816 = vpop.f32.mrb[0].mxu0
        %1817 = vdwg.mxu0
        %v1818 = vadd.f32 %v1665, %v1815
        %v1819 = vsel %vm296, %v1818, 0.0
        %1820 = vadd.xlane.f32.xlu0 %v1819
        %v1821 = vpop.xlane.xlu0 %1820
        %v1822 = vmul.f32 %v1821, %v852
        %v1823 = vsub.f32 %v1818, %v1822
        %v1824 = vmul.f32 %v1823, %v1823
        %v1825 = vsel %vm296, %v1824, 0.0
        %1826 = vadd.xlane.f32.xlu0 %v1825
        %v1827 = vpop.xlane.xlu0 %1826
        %v1828 = vmul.f32 %v1827, %v852
        %v1829 = vadd.f32 %v1828, 1e-05
        %v1830 = vrsqrt.pop %v1829
        %v1831 = vmul.f32 %v1823, %v1830
        %v1832 = vlaneseq
        %v1833 = vshrl.u32 %v1832, 7
        %v1834 = vsub.s32 7, %v1833
        %v1835 = vrot.slane %v1081, %v1834
        %v1836 = vmul.f32 %v1831, %v1835
        %v1837 = vlaneseq
        %v1838 = vshrl.u32 %v1837, 7
        %v1839 = vsub.s32 0, %v1838
        %v1840 = vrot.slane %v1082, %v1839
        %v1841 = vadd.f32 %v1836, %v1840
        %v1842 = vld [vmem:[%s2] sm:$0xff]
        %v1843 = vld [vmem:[%s2 + $0x8] sm:$0xff]
        %v1844 = vld [vmem:[%s2 + $0x10] sm:$0xff]
        %v1845 = vld [vmem:[%s2 + $0x18] sm:$0xff]
        %v1846 = vld [vmem:[%s2 + $0x20] sm:$0x1]
        %v1847 = vlaneseq
        %v1848 = vshrl.u32 %v1847, 7
        %v1849 = vsub.s32 0, %v1848
        %v1850 = vrot.slane %v1846, %v1849
        %v1852 = vsel %vm296, %v1841, 0
        %1854 = vmatprep.subr.mxu0 0.0
        %1855 = vmatpush1.msra.mxu0 %v1842
        %1856 = vmatprep.subr.mxu0 0.0
        %1857 = vmatpush1.msra.mxu0 %v1843
        %1858 = vmatprep.subr.mxu0 0.0
        %1859 = vmatpush1.msra.mxu0 %v1844
        %1860 = vmatprep.subr.mxu0 0.0
        %1861 = vmatpush1.msra.mxu0 %v1845
        %1862 = vmatprep.subr.mxu0 0.0
        %1863 = vmatpush1.msra.mxu0 0.0
        %1864 = vmatprep.subr.mxu0 0.0
        %1865 = vmatpush1.msra.mxu0 0.0
        %1866 = vmatprep.subr.mxu0 0.0
        %1867 = vmatpush1.msra.mxu0 0.0
        %1868 = vmatprep.subr.mxu0 0.0
        %1869 = vmatpush1.msra.mxu0 0.0
        %1870 = vmatprep.subr.mxu0 0.0
        %1871 = vmatpush1.msra.mxu0 0.0
        %1872 = vmatprep.subr.mxu0 0.0
        %1873 = vmatpush1.msra.mxu0 0.0
        %1874 = vmatprep.subr.mxu0 0.0
        %1875 = vmatpush1.msra.mxu0 0.0
        %1876 = vmatprep.subr.mxu0 0.0
        %1877 = vmatpush1.msra.mxu0 0.0
        %1878 = vmatprep.subr.mxu0 0.0
        %1879 = vmatpush1.msra.mxu0 0.0
        %1880 = vmatprep.subr.mxu0 0.0
        %1881 = vmatpush1.msra.mxu0 0.0
        %1882 = vmatprep.subr.mxu0 0.0
        %1883 = vmatpush1.msra.mxu0 0.0
        %1884 = vmatprep.subr.mxu0 0.0
        %1885 = vmatpush1.msra.mxu0 0.0
        %1886 = vmatprep.subr.mxu0 0.0
        %1887 = vmatpush1.msra.mxu0 0.0
        %1888 = vmatprep.subr.mxu0 0.0
        %1889 = vmatpush1.msra.mxu0 0.0
        %1890 = vmatprep.subr.mxu0 0.0
        %1891 = vmatpush1.msra.mxu0 0.0
        %1892 = vmatprep.subr.mxu0 0.0
        %1893 = vmatpush1.msra.mxu0 0.0
        %1894 = vmatprep.subr.mxu0 0.0
        %1895 = vmatpush1.msra.mxu0 0.0
        %1896 = vmatprep.subr.mxu0 0.0
        %1897 = vmatpush1.msra.mxu0 0.0
        %1898 = vmatprep.subr.mxu0 0.0
        %1899 = vmatpush1.msra.mxu0 0.0
        %1900 = vmatprep.subr.mxu0 0.0
        %1901 = vmatpush1.msra.mxu0 0.0
        %1902 = vmatprep.subr.mxu0 0.0
        %1903 = vmatpush1.msra.mxu0 0.0
        %1904 = vmatprep.subr.mxu0 0.0
        %1905 = vmatpush1.msra.mxu0 0.0
        %1906 = vmatprep.subr.mxu0 0.0
        %1907 = vmatpush1.msra.mxu0 0.0
        %1908 = vmatprep.subr.mxu0 0.0
        %1909 = vmatpush1.msra.mxu0 0.0
        %1910 = vmatprep.subr.mxu0 0.0
        %1911 = vmatpush1.msra.mxu0 0.0
        %1912 = vmatprep.subr.mxu0 0.0
        %1913 = vmatpush1.msra.mxu0 0.0
        %1914 = vmatprep.subr.mxu0 0.0
        %1915 = vmatpush1.msra.mxu0 0.0
        %1916 = vmatprep.subr.mxu0 0.0
        %1917 = vmatpush1.msra.mxu0 0.0
        %1918 = vmatprep.mubr.f32.mxu0 0.0
        %1919 = vmatmul.mubr.f32.gmra.mrb[0].mxu0 %v1852
        %v1920 = vpop.f32.mrb[0].mxu0
        %v1921 = vadd.f32 %v1850, %v1920
        %v1922 = vpop.f32.mrb[0].mxu0
        %1923 = vdwg.mxu0
        %1924 = vst [vmem:[%s161] sm:$0xff] %v1921
        %s1925 = sand.u32 %s93, 1
        %s1926 = scalar_lea.sflag [#allocation3], %s1925
        %s1927 = sand.u32 %s93, 1
        %s1928 = smul.addr %s1927, 8
        %s1929 = scalar_lea.vmem [#allocation2], %s1928
        // Predicated region
        $region33: #{pallas_forward.1} parent=31 // pred_check
          %p1930 = pneg %p103
        $region34: #{pallas_forward.1} parent=31 // pred_check_branch
          %1932 = sbr.rel (%p1930) target = $region36
        $region35: #{pallas_forward.1} parent=31 // pred_region
          %s1934 = ssub.s32 128, 128
          %1935 = vsyncadd %s1926, %s1934
          %s1936 = smul.addr %s17, 128
          %s1937 = scalar_lea.hbm %s3, %s1936
          %s1939 = sshll.u32 %s1929, 4
          %s1940 = int_to_ptr.vmem [resolvable:$true] %s1939
          %1942 = dma.vmem_to_hbm [thread:$0]  %s1940, 128, %s1937, %s1926
        $region36: #{pallas_forward.1} parent=31 // pred_fallthru
          _
      $region32: #{pallas_forward.1} parent=5 // pred_fallthru
        _
      %p1943 = scmp.le.s32.totalorder 2, %s12
      // Predicated region
      $region37: #{pallas_forward.1} parent=5 // pred_check
        %p1944 = pneg %p1943
      $region38: #{pallas_forward.1} parent=5 // pred_check_branch
        %1946 = sbr.rel (%p1944) target = $region40
      $region39: #{pallas_forward.1} parent=5 // pred_region
        %s1947 = ssub.s32 %s12, 2
        // Predicated region
        $region41: #{pallas_forward.1} parent=39 // pred_check
          %p1948 = pneg %p109
        $region42: #{pallas_forward.1} parent=39 // pred_check_branch
          %1950 = sbr.rel (%p1948) target = $region44
        $region43: #{pallas_forward.1} parent=39 // pred_region
          %s1951 = sand.u32 %s94, 1
          %s1952 = scalar_lea.sflag [#allocation3], %s1951
          %s1953 = sand.u32 %s94, 1
          %s1954 = smul.addr %s1953, 8
          %s1955 = scalar_lea.vmem [#allocation2], %s1954
          %1956 = dma.done %s1952, 128
        $region44: #{pallas_forward.1} parent=39 // pred_fallthru
          _
      $region40: #{pallas_forward.1} parent=5 // pred_fallthru
        _
    $region6: #{pallas_forward.1} parent=1 // loop_footer
      %s16 = sadd.s32 1, %s12
    $region7: #{pallas_forward.1} parent=1 // loop_footer_branch
      %11 = sbr.rel target = $region3
    $region8: #{pallas_forward.1} parent=1 // loop_exit
      _
    %1957 = vsyncpa [#allocation3], 1
    %s1958 = scalar_lea.sflag [#allocation3], 1
    %1959 = vsyncpa %s1958, 1

</llo_original>
